<compile_context>
chip_gen: v7x
topology: tpu7x:2x2x1
jax: 0.10.0
libtpu: 0.0.40
codegen_flags: <defaults>
</compile_context>

<pallas_src>
import functools

import jax
import jax.numpy as jnp
from jax.experimental import pallas as pl
from jax.experimental.pallas import tpu as pltpu


def stock_lstm_kernel(x_ref, wih0_ref, whh0_ref, b0_ref,
                      wih1_ref, whh1_ref, b1_ref, wfc_ref, bfc_ref,
                      out_ref, gin0_ref, *, T, Bp, H):
    """Whole forward pass in one grid step; recurrence via an unrolled fori_loop."""
    # ---- hoisted, non-recurrent work: layer-0 input projection for ALL timesteps.
    # One (T*Bp, I) @ (I, 4H) MXU matmul (+ bias, broadcast once) instead of T tiny
    # matmuls inside the serial loop.
    gin0_ref[...] = (jnp.dot(x_ref[...], wih0_ref[...],
                             preferred_element_type=jnp.float32)
                     + b0_ref[...])

    # Hoist loop-invariant weight reads / bias broadcast out of the recurrence.
    whh0 = whh0_ref[...]                                   # (H, 4H)
    wih1 = wih1_ref[...]                                   # (H, 4H)
    whh1 = whh1_ref[...]                                   # (H, 4H)
    b1 = jnp.broadcast_to(b1_ref[...], (Bp, 4 * H))        # broadcast once, not per step

    def activations(gates):
        # Gate columns are pre-permuted to [i, f, o | g]:
        # one dense sigmoid over the first 3H lanes, one dense tanh over the last H.
        sig = jax.nn.sigmoid(gates[:, :3 * H])
        g = jnp.tanh(gates[:, 3 * H:])
        return sig[:, :H], sig[:, H:2 * H], sig[:, 2 * H:3 * H], g

    def step(t, carry):
        h0, c0, h1, c1 = carry

        # Recurrent matmuls.  rec1 (layer-1's h @ Whh) is independent of this step's
        # layer-0 output, so the scheduler overlaps it with the layer-0 cell below.
        rec0 = jnp.dot(h0, whh0, preferred_element_type=jnp.float32)
        rec1 = jnp.dot(h1, whh1, preferred_element_type=jnp.float32)

        # ---- layer 0 cell (only rec0 + elementwise sits on the serial path here).
        g0 = gin0_ref[pl.ds(t * Bp, Bp), :] + rec0
        i0, f0, o0, gg0 = activations(g0)
        c0 = f0 * c0 + i0 * gg0
        h0 = o0 * jnp.tanh(c0)

        # ---- layer 1 cell: one small (Bp,H)@(H,4H) matmul after the layer-0 cell.
        g1 = jnp.dot(h0, wih1, preferred_element_type=jnp.float32) + rec1 + b1
        i1, f1, o1, gg1 = activations(g1)
        c1 = f1 * c1 + i1 * gg1
        h1 = o1 * jnp.tanh(c1)
        return h0, c0, h1, c1

    z = jnp.zeros((Bp, H), jnp.float32)
    _, _, h1, _ = jax.lax.fori_loop(0, T, step, (z, z, z, z), unroll=True)

    # fc(h_n[-1]) — weights zero-padded to 128 lanes -> unmasked lane-dense store.
    out_ref[...] = (jnp.dot(h1, wfc_ref[...], preferred_element_type=jnp.float32)
                    + bfc_ref[...])


def stock_lstm_forward(x, params):
    """x: (B, T, I) float32, batch_first like PyTorch. Returns (B, 2)."""
    B, T, I = x.shape
    H = params["w_hh_l0"].shape[1]
    Bp = ((B + 7) // 8) * 8                                 # pad batch to 8-sublane granule
    OUT_LANES = 128                                         # lane-dense output slab
    n_out = params["w_fc"].shape[0]                         # = 2

    # Wrapper-side layout plumbing: time-major, batch-padded, (T*Bp, I) flattened so the
    # kernel's layer-0 input projection is one big matmul.
    x_tm = jnp.transpose(x, (1, 0, 2))                      # (T, B, I)
    x_tm = jnp.pad(x_tm, ((0, 0), (0, Bp - B), (0, 0)))     # (T, Bp, I)
    x2d = x_tm.reshape(T * Bp, I)                           # (T*Bp, I)

    def perm_gates(w, axis=0):
        # Reorder PyTorch gate blocks [i, f, g, o] -> [i, f, o, g] so activations are
        # contiguous (sigmoid over [:, :3H], tanh over [:, 3H:]).
        i, f, g, o = jnp.split(w, 4, axis=axis)
        return jnp.concatenate([i, f, o, g], axis=axis)

    wih0 = perm_gates(params["w_ih_l0"]).T                  # (I, 4H)
    whh0 = perm_gates(params["w_hh_l0"]).T                  # (H, 4H)
    b0 = perm_gates(params["b_ih_l0"] + params["b_hh_l0"]).reshape(1, 4 * H)
    wih1 = perm_gates(params["w_ih_l1"]).T                  # (H, 4H)
    whh1 = perm_gates(params["w_hh_l1"]).T                  # (H, 4H)
    b1 = perm_gates(params["b_ih_l1"] + params["b_hh_l1"]).reshape(1, 4 * H)

    # Zero-pad FC weights/bias to 128 output lanes (extra lanes compute zeros).
    wfc = jnp.zeros((H, OUT_LANES), jnp.float32).at[:, :n_out].set(params["w_fc"].T)
    bfc = jnp.zeros((1, OUT_LANES), jnp.float32).at[:, :n_out].set(
        params["b_fc"].reshape(1, n_out))

    def full(a):
        nd = a.ndim
        return pl.BlockSpec(a.shape, lambda i, _nd=nd: (0,) * _nd)

    kernel = functools.partial(stock_lstm_kernel, T=T, Bp=Bp, H=H)

    out = pl.pallas_call(
        kernel,
        out_shape=jax.ShapeDtypeStruct((Bp, OUT_LANES), jnp.float32),
        grid_spec=pltpu.PrefetchScalarGridSpec(
            num_scalar_prefetch=0,
            grid=(1,),                                      # whole sequence in one step
            in_specs=[full(x2d), full(wih0), full(whh0), full(b0),
                      full(wih1), full(whh1), full(b1), full(wfc), full(bfc)],
            out_specs=pl.BlockSpec((Bp, OUT_LANES), lambda i: (0, 0)),
            scratch_shapes=[pltpu.VMEM((T * Bp, 4 * H), jnp.float32)],  # hoisted x-proj
        ),
        compiler_params=pltpu.CompilerParams(
            dimension_semantics=("arbitrary",)),
    )(x2d, wih0, whh0, b0, wih1, whh1, b1, wfc, bfc)

    return out[:B, :n_out]                                  # drop batch/lane padding


def ref_forward(x, p):
    """Pure-JAX reference matching nn.LSTM(batch_first=True) + nn.Linear."""
    B, T, I = x.shape
    H = p["w_hh_l0"].shape[1]

    def cell(x_t, h, c, w_ih, w_hh, b_ih, b_hh):
        gates = x_t @ w_ih.T + h @ w_hh.T + b_ih + b_hh
        i, f, g, o = jnp.split(gates, 4, axis=-1)
        c = jax.nn.sigmoid(f) * c + jax.nn.sigmoid(i) * jnp.tanh(g)
        h = jax.nn.sigmoid(o) * jnp.tanh(c)
        return h, c

    h0 = jnp.zeros((B, H)); c0 = jnp.zeros((B, H))
    h1 = jnp.zeros((B, H)); c1 = jnp.zeros((B, H))
    for t in range(T):
        h0, c0 = cell(x[:, t, :], h0, c0, p["w_ih_l0"], p["w_hh_l0"],
                      p["b_ih_l0"], p["b_hh_l0"])
        h1, c1 = cell(h0, h1, c1, p["w_ih_l1"], p["w_hh_l1"],
                      p["b_ih_l1"], p["b_hh_l1"])
    return h1 @ p["w_fc"].T + p["b_fc"]


def init_params(key, input_size, hidden_size):
    """Deterministic synthetic init (PyTorch uniform(-1/sqrt(H), 1/sqrt(H)) style)."""
    H = hidden_size
    bound = 1.0 / jnp.sqrt(jnp.float32(H))
    shapes = {
        "w_ih_l0": (4 * H, input_size), "w_hh_l0": (4 * H, H),
        "b_ih_l0": (4 * H,), "b_hh_l0": (4 * H,),
        "w_ih_l1": (4 * H, H), "w_hh_l1": (4 * H, H),
        "b_ih_l1": (4 * H,), "b_hh_l1": (4 * H,),
        "w_fc": (2, H), "b_fc": (2,),
    }
    params = {}
    for name, shp in shapes.items():
        key, sub = jax.random.split(key)
        params[name] = jax.random.uniform(sub, shp, jnp.float32, -bound, bound)
    return params


if __name__ == "__main__":
    B, T, I, H = 2, 8, 4, 32   # small shapes: batch=2, seq=8, input_size=4, hidden=32
    key = jax.random.PRNGKey(0)
    kx, kp = jax.random.split(key)
    x = jax.random.normal(kx, (B, T, I), jnp.float32)
    params = init_params(kp, I, H)

    out = jax.block_until_ready(stock_lstm_forward(x, params))
    ref = ref_forward(x, params)

    assert out.shape == (B, 2)
    assert jnp.allclose(out, ref, atol=1e-5, rtol=1e-5), (out, ref)
    print("KERNEL_OK")
</pallas_src>

<mosaic_0001>
module attributes {stable_mosaic.version = 11 : i64} {
  func.func @stock_lstm_kernel(%arg0: i32, %arg1: memref<64x4xf32, #tpu.memory_space<vmem>>, %arg2: memref<4x128xf32, #tpu.memory_space<vmem>>, %arg3: memref<32x128xf32, #tpu.memory_space<vmem>>, %arg4: memref<1x128xf32, #tpu.memory_space<vmem>>, %arg5: memref<32x128xf32, #tpu.memory_space<vmem>>, %arg6: memref<32x128xf32, #tpu.memory_space<vmem>>, %arg7: memref<1x128xf32, #tpu.memory_space<vmem>>, %arg8: memref<32x128xf32, #tpu.memory_space<vmem>>, %arg9: memref<1x128xf32, #tpu.memory_space<vmem>>, %arg10: memref<8x128xf32, #tpu.memory_space<vmem>>, %arg11: memref<64x128xf32, #tpu.memory_space<vmem>>) attributes {dimension_semantics = [#tpu.dimension_semantics<arbitrary>], iteration_bounds = array<i64: 1>, scalar_prefetch = 0 : i64, scratch_operands = 1 : i64, tpu.core_type = #tpu.core_type<tc>, window_params = [{pipeline_mode = #tpu.pipeline_mode<synchronous>, transform_indices = @transform_0, window_bounds = array<i64: 64, 4>}, {pipeline_mode = #tpu.pipeline_mode<synchronous>, transform_indices = @transform_1, window_bounds = array<i64: 4, 128>}, {pipeline_mode = #tpu.pipeline_mode<synchronous>, transform_indices = @transform_2, window_bounds = array<i64: 32, 128>}, {pipeline_mode = #tpu.pipeline_mode<synchronous>, transform_indices = @transform_3, window_bounds = array<i64: 1, 128>}, {pipeline_mode = #tpu.pipeline_mode<synchronous>, transform_indices = @transform_4, window_bounds = array<i64: 32, 128>}, {pipeline_mode = #tpu.pipeline_mode<synchronous>, transform_indices = @transform_5, window_bounds = array<i64: 32, 128>}, {pipeline_mode = #tpu.pipeline_mode<synchronous>, transform_indices = @transform_6, window_bounds = array<i64: 1, 128>}, {pipeline_mode = #tpu.pipeline_mode<synchronous>, transform_indices = @transform_7, window_bounds = array<i64: 32, 128>}, {pipeline_mode = #tpu.pipeline_mode<synchronous>, transform_indices = @transform_8, window_bounds = array<i64: 1, 128>}, {pipeline_mode = #tpu.pipeline_mode<synchronous>, transform_indices = @transform_9, window_bounds = array<i64: 8, 128>}]} {
    %c0 = arith.constant 0 : index
    %c0_0 = arith.constant 0 : index
    %0 = vector.load %arg1[%c0, %c0_0] : memref<64x4xf32, #tpu.memory_space<vmem>>, vector<64x4xf32>
    %c0_1 = arith.constant 0 : index
    %c0_2 = arith.constant 0 : index
    %1 = vector.load %arg2[%c0_1, %c0_2] : memref<4x128xf32, #tpu.memory_space<vmem>>, vector<4x128xf32>
    %cst = arith.constant dense<0.000000e+00> : vector<64x128xf32>
    %2 = tpu.matmul %0, %1, %cst {dimension_numbers = #tpu.dot_dimension_numbers<[1], [0], [0], [1], [0, 0, 1, 1], [], []>} : vector<64x4xf32>, vector<4x128xf32>, vector<64x128xf32> -> vector<64x128xf32>
    %c0_3 = arith.constant 0 : index
    %c0_4 = arith.constant 0 : index
    %3 = vector.load %arg4[%c0_3, %c0_4] : memref<1x128xf32, #tpu.memory_space<vmem>>, vector<1x128xf32>
    %4 = vector.broadcast %3 : vector<1x128xf32> to vector<64x128xf32>
    %5 = arith.addf %2, %4 : vector<64x128xf32>
    %c0_5 = arith.constant 0 : index
    %c0_6 = arith.constant 0 : index
    %6 = vector.load %arg11[%c0_5, %c0_6] : memref<64x128xf32, #tpu.memory_space<vmem>>, vector<64x128xf32>
    tpu.vector_store %arg11[%c0_5, %c0_6], %5 {strides = array<i32>} : memref<64x128xf32, #tpu.memory_space<vmem>>, vector<64x128xf32>,
    %c0_7 = arith.constant 0 : index
    %c0_8 = arith.constant 0 : index
    %7 = vector.load %arg3[%c0_7, %c0_8] : memref<32x128xf32, #tpu.memory_space<vmem>>, vector<32x128xf32>
    %c0_9 = arith.constant 0 : index
    %c0_10 = arith.constant 0 : index
    %8 = vector.load %arg5[%c0_9, %c0_10] : memref<32x128xf32, #tpu.memory_space<vmem>>, vector<32x128xf32>
    %c0_11 = arith.constant 0 : index
    %c0_12 = arith.constant 0 : index
    %9 = vector.load %arg6[%c0_11, %c0_12] : memref<32x128xf32, #tpu.memory_space<vmem>>, vector<32x128xf32>
    %c0_13 = arith.constant 0 : index
    %c0_14 = arith.constant 0 : index
    %10 = vector.load %arg7[%c0_13, %c0_14] : memref<1x128xf32, #tpu.memory_space<vmem>>, vector<1x128xf32>
    %11 = vector.shape_cast %10 : vector<1x128xf32> to vector<1x128xf32>
    %12 = vector.broadcast %11 : vector<1x128xf32> to vector<8x128xf32>
    %cst_15 = arith.constant 0.000000e+00 : f32
    %13 = vector.broadcast %cst_15 : f32 to vector<8x32xf32>
    %c0_i32 = arith.constant 0 : i32
    %cst_16 = arith.constant dense<0.000000e+00> : vector<8x128xf32>
    %14 = tpu.matmul %13, %7, %cst_16 {dimension_numbers = #tpu.dot_dimension_numbers<[1], [0], [0], [1], [0, 0, 1, 1], [], []>} : vector<8x32xf32>, vector<32x128xf32>, vector<8x128xf32> -> vector<8x128xf32>
    %cst_17 = arith.constant dense<0.000000e+00> : vector<8x128xf32>
    %15 = tpu.matmul %13, %9, %cst_17 {dimension_numbers = #tpu.dot_dimension_numbers<[1], [0], [0], [1], [0, 0, 1, 1], [], []>} : vector<8x32xf32>, vector<32x128xf32>, vector<8x128xf32> -> vector<8x128xf32>
    %c8_i32 = arith.constant 8 : i32
    %16 = arith.muli %c0_i32, %c8_i32 : i32
    %17 = arith.index_cast %16 : i32 to index
    %c0_18 = arith.constant 0 : index
    %18 = vector.load %arg11[%17, %c0_18] : memref<64x128xf32, #tpu.memory_space<vmem>>, vector<8x128xf32>
    %19 = arith.addf %18, %14 : vector<8x128xf32>
    %20 = vector.extract_strided_slice %19 {offsets = [0, 0], sizes = [8, 96], strides = [1, 1]} : vector<8x128xf32> to vector<8x96xf32>
    %21 = arith.negf %20 : vector<8x96xf32>
    %22 = math.exp %21 : vector<8x96xf32>
    %cst_19 = arith.constant 1.000000e+00 : f32
    %23 = vector.broadcast %cst_19 : f32 to vector<8x96xf32>
    %24 = arith.addf %23, %22 : vector<8x96xf32>
    %25 = arith.divf %23, %24 : vector<8x96xf32>
    %26 = vector.extract_strided_slice %19 {offsets = [0, 96], sizes = [8, 32], strides = [1, 1]} : vector<8x128xf32> to vector<8x32xf32>
    %27 = math.tanh %26 : vector<8x32xf32>
    %28 = vector.extract_strided_slice %25 {offsets = [0, 0], sizes = [8, 32], strides = [1, 1]} : vector<8x96xf32> to vector<8x32xf32>
    %29 = vector.extract_strided_slice %25 {offsets = [0, 32], sizes = [8, 32], strides = [1, 1]} : vector<8x96xf32> to vector<8x32xf32>
    %30 = vector.extract_strided_slice %25 {offsets = [0, 64], sizes = [8, 32], strides = [1, 1]} : vector<8x96xf32> to vector<8x32xf32>
    %31 = arith.mulf %29, %13 : vector<8x32xf32>
    %32 = arith.mulf %28, %27 : vector<8x32xf32>
    %33 = arith.addf %31, %32 : vector<8x32xf32>
    %34 = math.tanh %33 : vector<8x32xf32>
    %35 = arith.mulf %30, %34 : vector<8x32xf32>
    %cst_20 = arith.constant dense<0.000000e+00> : vector<8x128xf32>
    %36 = tpu.matmul %35, %8, %cst_20 {dimension_numbers = #tpu.dot_dimension_numbers<[1], [0], [0], [1], [0, 0, 1, 1], [], []>} : vector<8x32xf32>, vector<32x128xf32>, vector<8x128xf32> -> vector<8x128xf32>
    %37 = arith.addf %36, %15 : vector<8x128xf32>
    %38 = arith.addf %37, %12 : vector<8x128xf32>
    %39 = vector.extract_strided_slice %38 {offsets = [0, 0], sizes = [8, 96], strides = [1, 1]} : vector<8x128xf32> to vector<8x96xf32>
    %40 = arith.negf %39 : vector<8x96xf32>
    %41 = math.exp %40 : vector<8x96xf32>
    %cst_21 = arith.constant 1.000000e+00 : f32
    %42 = vector.broadcast %cst_21 : f32 to vector<8x96xf32>
    %43 = arith.addf %42, %41 : vector<8x96xf32>
    %44 = arith.divf %42, %43 : vector<8x96xf32>
    %45 = vector.extract_strided_slice %38 {offsets = [0, 96], sizes = [8, 32], strides = [1, 1]} : vector<8x128xf32> to vector<8x32xf32>
    %46 = math.tanh %45 : vector<8x32xf32>
    %47 = vector.extract_strided_slice %44 {offsets = [0, 0], sizes = [8, 32], strides = [1, 1]} : vector<8x96xf32> to vector<8x32xf32>
    %48 = vector.extract_strided_slice %44 {offsets = [0, 32], sizes = [8, 32], strides = [1, 1]} : vector<8x96xf32> to vector<8x32xf32>
    %49 = vector.extract_strided_slice %44 {offsets = [0, 64], sizes = [8, 32], strides = [1, 1]} : vector<8x96xf32> to vector<8x32xf32>
    %50 = arith.mulf %48, %13 : vector<8x32xf32>
    %51 = arith.mulf %47, %46 : vector<8x32xf32>
    %52 = arith.addf %50, %51 : vector<8x32xf32>
    %53 = math.tanh %52 : vector<8x32xf32>
    %54 = arith.mulf %49, %53 : vector<8x32xf32>
    %c1_i32 = arith.constant 1 : i32
    %cst_22 = arith.constant dense<0.000000e+00> : vector<8x128xf32>
    %55 = tpu.matmul %35, %7, %cst_22 {dimension_numbers = #tpu.dot_dimension_numbers<[1], [0], [0], [1], [0, 0, 1, 1], [], []>} : vector<8x32xf32>, vector<32x128xf32>, vector<8x128xf32> -> vector<8x128xf32>
    %cst_23 = arith.constant dense<0.000000e+00> : vector<8x128xf32>
    %56 = tpu.matmul %54, %9, %cst_23 {dimension_numbers = #tpu.dot_dimension_numbers<[1], [0], [0], [1], [0, 0, 1, 1], [], []>} : vector<8x32xf32>, vector<32x128xf32>, vector<8x128xf32> -> vector<8x128xf32>
    %c8_i32_24 = arith.constant 8 : i32
    %57 = arith.muli %c1_i32, %c8_i32_24 : i32
    %58 = arith.index_cast %57 : i32 to index
    %c0_25 = arith.constant 0 : index
    %59 = vector.load %arg11[%58, %c0_25] : memref<64x128xf32, #tpu.memory_space<vmem>>, vector<8x128xf32>
    %60 = arith.addf %59, %55 : vector<8x128xf32>
    %61 = vector.extract_strided_slice %60 {offsets = [0, 0], sizes = [8, 96], strides = [1, 1]} : vector<8x128xf32> to vector<8x96xf32>
    %62 = arith.negf %61 : vector<8x96xf32>
    %63 = math.exp %62 : vector<8x96xf32>
    %cst_26 = arith.constant 1.000000e+00 : f32
    %64 = vector.broadcast %cst_26 : f32 to vector<8x96xf32>
    %65 = arith.addf %64, %63 : vector<8x96xf32>
    %66 = arith.divf %64, %65 : vector<8x96xf32>
    %67 = vector.extract_strided_slice %60 {offsets = [0, 96], sizes = [8, 32], strides = [1, 1]} : vector<8x128xf32> to vector<8x32xf32>
    %68 = math.tanh %67 : vector<8x32xf32>
    %69 = vector.extract_strided_slice %66 {offsets = [0, 0], sizes = [8, 32], strides = [1, 1]} : vector<8x96xf32> to vector<8x32xf32>
    %70 = vector.extract_strided_slice %66 {offsets = [0, 32], sizes = [8, 32], strides = [1, 1]} : vector<8x96xf32> to vector<8x32xf32>
    %71 = vector.extract_strided_slice %66 {offsets = [0, 64], sizes = [8, 32], strides = [1, 1]} : vector<8x96xf32> to vector<8x32xf32>
    %72 = arith.mulf %70, %33 : vector<8x32xf32>
    %73 = arith.mulf %69, %68 : vector<8x32xf32>
    %74 = arith.addf %72, %73 : vector<8x32xf32>
    %75 = math.tanh %74 : vector<8x32xf32>
    %76 = arith.mulf %71, %75 : vector<8x32xf32>
    %cst_27 = arith.constant dense<0.000000e+00> : vector<8x128xf32>
    %77 = tpu.matmul %76, %8, %cst_27 {dimension_numbers = #tpu.dot_dimension_numbers<[1], [0], [0], [1], [0, 0, 1, 1], [], []>} : vector<8x32xf32>, vector<32x128xf32>, vector<8x128xf32> -> vector<8x128xf32>
    %78 = arith.addf %77, %56 : vector<8x128xf32>
    %79 = arith.addf %78, %12 : vector<8x128xf32>
    %80 = vector.extract_strided_slice %79 {offsets = [0, 0], sizes = [8, 96], strides = [1, 1]} : vector<8x128xf32> to vector<8x96xf32>
    %81 = arith.negf %80 : vector<8x96xf32>
    %82 = math.exp %81 : vector<8x96xf32>
    %cst_28 = arith.constant 1.000000e+00 : f32
    %83 = vector.broadcast %cst_28 : f32 to vector<8x96xf32>
    %84 = arith.addf %83, %82 : vector<8x96xf32>
    %85 = arith.divf %83, %84 : vector<8x96xf32>
    %86 = vector.extract_strided_slice %79 {offsets = [0, 96], sizes = [8, 32], strides = [1, 1]} : vector<8x128xf32> to vector<8x32xf32>
    %87 = math.tanh %86 : vector<8x32xf32>
    %88 = vector.extract_strided_slice %85 {offsets = [0, 0], sizes = [8, 32], strides = [1, 1]} : vector<8x96xf32> to vector<8x32xf32>
    %89 = vector.extract_strided_slice %85 {offsets = [0, 32], sizes = [8, 32], strides = [1, 1]} : vector<8x96xf32> to vector<8x32xf32>
    %90 = vector.extract_strided_slice %85 {offsets = [0, 64], sizes = [8, 32], strides = [1, 1]} : vector<8x96xf32> to vector<8x32xf32>
    %91 = arith.mulf %89, %52 : vector<8x32xf32>
    %92 = arith.mulf %88, %87 : vector<8x32xf32>
    %93 = arith.addf %91, %92 : vector<8x32xf32>
    %94 = math.tanh %93 : vector<8x32xf32>
    %95 = arith.mulf %90, %94 : vector<8x32xf32>
    %c2_i32 = arith.constant 2 : i32
    %cst_29 = arith.constant dense<0.000000e+00> : vector<8x128xf32>
    %96 = tpu.matmul %76, %7, %cst_29 {dimension_numbers = #tpu.dot_dimension_numbers<[1], [0], [0], [1], [0, 0, 1, 1], [], []>} : vector<8x32xf32>, vector<32x128xf32>, vector<8x128xf32> -> vector<8x128xf32>
    %cst_30 = arith.constant dense<0.000000e+00> : vector<8x128xf32>
    %97 = tpu.matmul %95, %9, %cst_30 {dimension_numbers = #tpu.dot_dimension_numbers<[1], [0], [0], [1], [0, 0, 1, 1], [], []>} : vector<8x32xf32>, vector<32x128xf32>, vector<8x128xf32> -> vector<8x128xf32>
    %c8_i32_31 = arith.constant 8 : i32
    %98 = arith.muli %c2_i32, %c8_i32_31 : i32
    %99 = arith.index_cast %98 : i32 to index
    %c0_32 = arith.constant 0 : index
    %100 = vector.load %arg11[%99, %c0_32] : memref<64x128xf32, #tpu.memory_space<vmem>>, vector<8x128xf32>
    %101 = arith.addf %100, %96 : vector<8x128xf32>
    %102 = vector.extract_strided_slice %101 {offsets = [0, 0], sizes = [8, 96], strides = [1, 1]} : vector<8x128xf32> to vector<8x96xf32>
    %103 = arith.negf %102 : vector<8x96xf32>
    %104 = math.exp %103 : vector<8x96xf32>
    %cst_33 = arith.constant 1.000000e+00 : f32
    %105 = vector.broadcast %cst_33 : f32 to vector<8x96xf32>
    %106 = arith.addf %105, %104 : vector<8x96xf32>
    %107 = arith.divf %105, %106 : vector<8x96xf32>
    %108 = vector.extract_strided_slice %101 {offsets = [0, 96], sizes = [8, 32], strides = [1, 1]} : vector<8x128xf32> to vector<8x32xf32>
    %109 = math.tanh %108 : vector<8x32xf32>
    %110 = vector.extract_strided_slice %107 {offsets = [0, 0], sizes = [8, 32], strides = [1, 1]} : vector<8x96xf32> to vector<8x32xf32>
    %111 = vector.extract_strided_slice %107 {offsets = [0, 32], sizes = [8, 32], strides = [1, 1]} : vector<8x96xf32> to vector<8x32xf32>
    %112 = vector.extract_strided_slice %107 {offsets = [0, 64], sizes = [8, 32], strides = [1, 1]} : vector<8x96xf32> to vector<8x32xf32>
    %113 = arith.mulf %111, %74 : vector<8x32xf32>
    %114 = arith.mulf %110, %109 : vector<8x32xf32>
    %115 = arith.addf %113, %114 : vector<8x32xf32>
    %116 = math.tanh %115 : vector<8x32xf32>
    %117 = arith.mulf %112, %116 : vector<8x32xf32>
    %cst_34 = arith.constant dense<0.000000e+00> : vector<8x128xf32>
    %118 = tpu.matmul %117, %8, %cst_34 {dimension_numbers = #tpu.dot_dimension_numbers<[1], [0], [0], [1], [0, 0, 1, 1], [], []>} : vector<8x32xf32>, vector<32x128xf32>, vector<8x128xf32> -> vector<8x128xf32>
    %119 = arith.addf %118, %97 : vector<8x128xf32>
    %120 = arith.addf %119, %12 : vector<8x128xf32>
    %121 = vector.extract_strided_slice %120 {offsets = [0, 0], sizes = [8, 96], strides = [1, 1]} : vector<8x128xf32> to vector<8x96xf32>
    %122 = arith.negf %121 : vector<8x96xf32>
    %123 = math.exp %122 : vector<8x96xf32>
    %cst_35 = arith.constant 1.000000e+00 : f32
    %124 = vector.broadcast %cst_35 : f32 to vector<8x96xf32>
    %125 = arith.addf %124, %123 : vector<8x96xf32>
    %126 = arith.divf %124, %125 : vector<8x96xf32>
    %127 = vector.extract_strided_slice %120 {offsets = [0, 96], sizes = [8, 32], strides = [1, 1]} : vector<8x128xf32> to vector<8x32xf32>
    %128 = math.tanh %127 : vector<8x32xf32>
    %129 = vector.extract_strided_slice %126 {offsets = [0, 0], sizes = [8, 32], strides = [1, 1]} : vector<8x96xf32> to vector<8x32xf32>
    %130 = vector.extract_strided_slice %126 {offsets = [0, 32], sizes = [8, 32], strides = [1, 1]} : vector<8x96xf32> to vector<8x32xf32>
    %131 = vector.extract_strided_slice %126 {offsets = [0, 64], sizes = [8, 32], strides = [1, 1]} : vector<8x96xf32> to vector<8x32xf32>
    %132 = arith.mulf %130, %93 : vector<8x32xf32>
    %133 = arith.mulf %129, %128 : vector<8x32xf32>
    %134 = arith.addf %132, %133 : vector<8x32xf32>
    %135 = math.tanh %134 : vector<8x32xf32>
    %136 = arith.mulf %131, %135 : vector<8x32xf32>
    %c3_i32 = arith.constant 3 : i32
    %cst_36 = arith.constant dense<0.000000e+00> : vector<8x128xf32>
    %137 = tpu.matmul %117, %7, %cst_36 {dimension_numbers = #tpu.dot_dimension_numbers<[1], [0], [0], [1], [0, 0, 1, 1], [], []>} : vector<8x32xf32>, vector<32x128xf32>, vector<8x128xf32> -> vector<8x128xf32>
    %cst_37 = arith.constant dense<0.000000e+00> : vector<8x128xf32>
    %138 = tpu.matmul %136, %9, %cst_37 {dimension_numbers = #tpu.dot_dimension_numbers<[1], [0], [0], [1], [0, 0, 1, 1], [], []>} : vector<8x32xf32>, vector<32x128xf32>, vector<8x128xf32> -> vector<8x128xf32>
    %c8_i32_38 = arith.constant 8 : i32
    %139 = arith.muli %c3_i32, %c8_i32_38 : i32
    %140 = arith.index_cast %139 : i32 to index
    %c0_39 = arith.constant 0 : index
    %141 = vector.load %arg11[%140, %c0_39] : memref<64x128xf32, #tpu.memory_space<vmem>>, vector<8x128xf32>
    %142 = arith.addf %141, %137 : vector<8x128xf32>
    %143 = vector.extract_strided_slice %142 {offsets = [0, 0], sizes = [8, 96], strides = [1, 1]} : vector<8x128xf32> to vector<8x96xf32>
    %144 = arith.negf %143 : vector<8x96xf32>
    %145 = math.exp %144 : vector<8x96xf32>
    %cst_40 = arith.constant 1.000000e+00 : f32
    %146 = vector.broadcast %cst_40 : f32 to vector<8x96xf32>
    %147 = arith.addf %146, %145 : vector<8x96xf32>
    %148 = arith.divf %146, %147 : vector<8x96xf32>
    %149 = vector.extract_strided_slice %142 {offsets = [0, 96], sizes = [8, 32], strides = [1, 1]} : vector<8x128xf32> to vector<8x32xf32>
    %150 = math.tanh %149 : vector<8x32xf32>
    %151 = vector.extract_strided_slice %148 {offsets = [0, 0], sizes = [8, 32], strides = [1, 1]} : vector<8x96xf32> to vector<8x32xf32>
    %152 = vector.extract_strided_slice %148 {offsets = [0, 32], sizes = [8, 32], strides = [1, 1]} : vector<8x96xf32> to vector<8x32xf32>
    %153 = vector.extract_strided_slice %148 {offsets = [0, 64], sizes = [8, 32], strides = [1, 1]} : vector<8x96xf32> to vector<8x32xf32>
    %154 = arith.mulf %152, %115 : vector<8x32xf32>
    %155 = arith.mulf %151, %150 : vector<8x32xf32>
    %156 = arith.addf %154, %155 : vector<8x32xf32>
    %157 = math.tanh %156 : vector<8x32xf32>
    %158 = arith.mulf %153, %157 : vector<8x32xf32>
    %cst_41 = arith.constant dense<0.000000e+00> : vector<8x128xf32>
    %159 = tpu.matmul %158, %8, %cst_41 {dimension_numbers = #tpu.dot_dimension_numbers<[1], [0], [0], [1], [0, 0, 1, 1], [], []>} : vector<8x32xf32>, vector<32x128xf32>, vector<8x128xf32> -> vector<8x128xf32>
    %160 = arith.addf %159, %138 : vector<8x128xf32>
    %161 = arith.addf %160, %12 : vector<8x128xf32>
    %162 = vector.extract_strided_slice %161 {offsets = [0, 0], sizes = [8, 96], strides = [1, 1]} : vector<8x128xf32> to vector<8x96xf32>
    %163 = arith.negf %162 : vector<8x96xf32>
    %164 = math.exp %163 : vector<8x96xf32>
    %cst_42 = arith.constant 1.000000e+00 : f32
    %165 = vector.broadcast %cst_42 : f32 to vector<8x96xf32>
    %166 = arith.addf %165, %164 : vector<8x96xf32>
    %167 = arith.divf %165, %166 : vector<8x96xf32>
    %168 = vector.extract_strided_slice %161 {offsets = [0, 96], sizes = [8, 32], strides = [1, 1]} : vector<8x128xf32> to vector<8x32xf32>
    %169 = math.tanh %168 : vector<8x32xf32>
    %170 = vector.extract_strided_slice %167 {offsets = [0, 0], sizes = [8, 32], strides = [1, 1]} : vector<8x96xf32> to vector<8x32xf32>
    %171 = vector.extract_strided_slice %167 {offsets = [0, 32], sizes = [8, 32], strides = [1, 1]} : vector<8x96xf32> to vector<8x32xf32>
    %172 = vector.extract_strided_slice %167 {offsets = [0, 64], sizes = [8, 32], strides = [1, 1]} : vector<8x96xf32> to vector<8x32xf32>
    %173 = arith.mulf %171, %134 : vector<8x32xf32>
    %174 = arith.mulf %170, %169 : vector<8x32xf32>
    %175 = arith.addf %173, %174 : vector<8x32xf32>
    %176 = math.tanh %175 : vector<8x32xf32>
    %177 = arith.mulf %172, %176 : vector<8x32xf32>
    %c4_i32 = arith.constant 4 : i32
    %cst_43 = arith.constant dense<0.000000e+00> : vector<8x128xf32>
    %178 = tpu.matmul %158, %7, %cst_43 {dimension_numbers = #tpu.dot_dimension_numbers<[1], [0], [0], [1], [0, 0, 1, 1], [], []>} : vector<8x32xf32>, vector<32x128xf32>, vector<8x128xf32> -> vector<8x128xf32>
    %cst_44 = arith.constant dense<0.000000e+00> : vector<8x128xf32>
    %179 = tpu.matmul %177, %9, %cst_44 {dimension_numbers = #tpu.dot_dimension_numbers<[1], [0], [0], [1], [0, 0, 1, 1], [], []>} : vector<8x32xf32>, vector<32x128xf32>, vector<8x128xf32> -> vector<8x128xf32>
    %c8_i32_45 = arith.constant 8 : i32
    %180 = arith.muli %c4_i32, %c8_i32_45 : i32
    %181 = arith.index_cast %180 : i32 to index
    %c0_46 = arith.constant 0 : index
    %182 = vector.load %arg11[%181, %c0_46] : memref<64x128xf32, #tpu.memory_space<vmem>>, vector<8x128xf32>
    %183 = arith.addf %182, %178 : vector<8x128xf32>
    %184 = vector.extract_strided_slice %183 {offsets = [0, 0], sizes = [8, 96], strides = [1, 1]} : vector<8x128xf32> to vector<8x96xf32>
    %185 = arith.negf %184 : vector<8x96xf32>
    %186 = math.exp %185 : vector<8x96xf32>
    %cst_47 = arith.constant 1.000000e+00 : f32
    %187 = vector.broadcast %cst_47 : f32 to vector<8x96xf32>
    %188 = arith.addf %187, %186 : vector<8x96xf32>
    %189 = arith.divf %187, %188 : vector<8x96xf32>
    %190 = vector.extract_strided_slice %183 {offsets = [0, 96], sizes = [8, 32], strides = [1, 1]} : vector<8x128xf32> to vector<8x32xf32>
    %191 = math.tanh %190 : vector<8x32xf32>
    %192 = vector.extract_strided_slice %189 {offsets = [0, 0], sizes = [8, 32], strides = [1, 1]} : vector<8x96xf32> to vector<8x32xf32>
    %193 = vector.extract_strided_slice %189 {offsets = [0, 32], sizes = [8, 32], strides = [1, 1]} : vector<8x96xf32> to vector<8x32xf32>
    %194 = vector.extract_strided_slice %189 {offsets = [0, 64], sizes = [8, 32], strides = [1, 1]} : vector<8x96xf32> to vector<8x32xf32>
    %195 = arith.mulf %193, %156 : vector<8x32xf32>
    %196 = arith.mulf %192, %191 : vector<8x32xf32>
    %197 = arith.addf %195, %196 : vector<8x32xf32>
    %198 = math.tanh %197 : vector<8x32xf32>
    %199 = arith.mulf %194, %198 : vector<8x32xf32>
    %cst_48 = arith.constant dense<0.000000e+00> : vector<8x128xf32>
    %200 = tpu.matmul %199, %8, %cst_48 {dimension_numbers = #tpu.dot_dimension_numbers<[1], [0], [0], [1], [0, 0, 1, 1], [], []>} : vector<8x32xf32>, vector<32x128xf32>, vector<8x128xf32> -> vector<8x128xf32>
    %201 = arith.addf %200, %179 : vector<8x128xf32>
    %202 = arith.addf %201, %12 : vector<8x128xf32>
    %203 = vector.extract_strided_slice %202 {offsets = [0, 0], sizes = [8, 96], strides = [1, 1]} : vector<8x128xf32> to vector<8x96xf32>
    %204 = arith.negf %203 : vector<8x96xf32>
    %205 = math.exp %204 : vector<8x96xf32>
    %cst_49 = arith.constant 1.000000e+00 : f32
    %206 = vector.broadcast %cst_49 : f32 to vector<8x96xf32>
    %207 = arith.addf %206, %205 : vector<8x96xf32>
    %208 = arith.divf %206, %207 : vector<8x96xf32>
    %209 = vector.extract_strided_slice %202 {offsets = [0, 96], sizes = [8, 32], strides = [1, 1]} : vector<8x128xf32> to vector<8x32xf32>
    %210 = math.tanh %209 : vector<8x32xf32>
    %211 = vector.extract_strided_slice %208 {offsets = [0, 0], sizes = [8, 32], strides = [1, 1]} : vector<8x96xf32> to vector<8x32xf32>
    %212 = vector.extract_strided_slice %208 {offsets = [0, 32], sizes = [8, 32], strides = [1, 1]} : vector<8x96xf32> to vector<8x32xf32>
    %213 = vector.extract_strided_slice %208 {offsets = [0, 64], sizes = [8, 32], strides = [1, 1]} : vector<8x96xf32> to vector<8x32xf32>
    %214 = arith.mulf %212, %175 : vector<8x32xf32>
    %215 = arith.mulf %211, %210 : vector<8x32xf32>
    %216 = arith.addf %214, %215 : vector<8x32xf32>
    %217 = math.tanh %216 : vector<8x32xf32>
    %218 = arith.mulf %213, %217 : vector<8x32xf32>
    %c5_i32 = arith.constant 5 : i32
    %cst_50 = arith.constant dense<0.000000e+00> : vector<8x128xf32>
    %219 = tpu.matmul %199, %7, %cst_50 {dimension_numbers = #tpu.dot_dimension_numbers<[1], [0], [0], [1], [0, 0, 1, 1], [], []>} : vector<8x32xf32>, vector<32x128xf32>, vector<8x128xf32> -> vector<8x128xf32>
    %cst_51 = arith.constant dense<0.000000e+00> : vector<8x128xf32>
    %220 = tpu.matmul %218, %9, %cst_51 {dimension_numbers = #tpu.dot_dimension_numbers<[1], [0], [0], [1], [0, 0, 1, 1], [], []>} : vector<8x32xf32>, vector<32x128xf32>, vector<8x128xf32> -> vector<8x128xf32>
    %c8_i32_52 = arith.constant 8 : i32
    %221 = arith.muli %c5_i32, %c8_i32_52 : i32
    %222 = arith.index_cast %221 : i32 to index
    %c0_53 = arith.constant 0 : index
    %223 = vector.load %arg11[%222, %c0_53] : memref<64x128xf32, #tpu.memory_space<vmem>>, vector<8x128xf32>
    %224 = arith.addf %223, %219 : vector<8x128xf32>
    %225 = vector.extract_strided_slice %224 {offsets = [0, 0], sizes = [8, 96], strides = [1, 1]} : vector<8x128xf32> to vector<8x96xf32>
    %226 = arith.negf %225 : vector<8x96xf32>
    %227 = math.exp %226 : vector<8x96xf32>
    %cst_54 = arith.constant 1.000000e+00 : f32
    %228 = vector.broadcast %cst_54 : f32 to vector<8x96xf32>
    %229 = arith.addf %228, %227 : vector<8x96xf32>
    %230 = arith.divf %228, %229 : vector<8x96xf32>
    %231 = vector.extract_strided_slice %224 {offsets = [0, 96], sizes = [8, 32], strides = [1, 1]} : vector<8x128xf32> to vector<8x32xf32>
    %232 = math.tanh %231 : vector<8x32xf32>
    %233 = vector.extract_strided_slice %230 {offsets = [0, 0], sizes = [8, 32], strides = [1, 1]} : vector<8x96xf32> to vector<8x32xf32>
    %234 = vector.extract_strided_slice %230 {offsets = [0, 32], sizes = [8, 32], strides = [1, 1]} : vector<8x96xf32> to vector<8x32xf32>
    %235 = vector.extract_strided_slice %230 {offsets = [0, 64], sizes = [8, 32], strides = [1, 1]} : vector<8x96xf32> to vector<8x32xf32>
    %236 = arith.mulf %234, %197 : vector<8x32xf32>
    %237 = arith.mulf %233, %232 : vector<8x32xf32>
    %238 = arith.addf %236, %237 : vector<8x32xf32>
    %239 = math.tanh %238 : vector<8x32xf32>
    %240 = arith.mulf %235, %239 : vector<8x32xf32>
    %cst_55 = arith.constant dense<0.000000e+00> : vector<8x128xf32>
    %241 = tpu.matmul %240, %8, %cst_55 {dimension_numbers = #tpu.dot_dimension_numbers<[1], [0], [0], [1], [0, 0, 1, 1], [], []>} : vector<8x32xf32>, vector<32x128xf32>, vector<8x128xf32> -> vector<8x128xf32>
    %242 = arith.addf %241, %220 : vector<8x128xf32>
    %243 = arith.addf %242, %12 : vector<8x128xf32>
    %244 = vector.extract_strided_slice %243 {offsets = [0, 0], sizes = [8, 96], strides = [1, 1]} : vector<8x128xf32> to vector<8x96xf32>
    %245 = arith.negf %244 : vector<8x96xf32>
    %246 = math.exp %245 : vector<8x96xf32>
    %cst_56 = arith.constant 1.000000e+00 : f32
    %247 = vector.broadcast %cst_56 : f32 to vector<8x96xf32>
    %248 = arith.addf %247, %246 : vector<8x96xf32>
    %249 = arith.divf %247, %248 : vector<8x96xf32>
    %250 = vector.extract_strided_slice %243 {offsets = [0, 96], sizes = [8, 32], strides = [1, 1]} : vector<8x128xf32> to vector<8x32xf32>
    %251 = math.tanh %250 : vector<8x32xf32>
    %252 = vector.extract_strided_slice %249 {offsets = [0, 0], sizes = [8, 32], strides = [1, 1]} : vector<8x96xf32> to vector<8x32xf32>
    %253 = vector.extract_strided_slice %249 {offsets = [0, 32], sizes = [8, 32], strides = [1, 1]} : vector<8x96xf32> to vector<8x32xf32>
    %254 = vector.extract_strided_slice %249 {offsets = [0, 64], sizes = [8, 32], strides = [1, 1]} : vector<8x96xf32> to vector<8x32xf32>
    %255 = arith.mulf %253, %216 : vector<8x32xf32>
    %256 = arith.mulf %252, %251 : vector<8x32xf32>
    %257 = arith.addf %255, %256 : vector<8x32xf32>
    %258 = math.tanh %257 : vector<8x32xf32>
    %259 = arith.mulf %254, %258 : vector<8x32xf32>
    %c6_i32 = arith.constant 6 : i32
    %cst_57 = arith.constant dense<0.000000e+00> : vector<8x128xf32>
    %260 = tpu.matmul %240, %7, %cst_57 {dimension_numbers = #tpu.dot_dimension_numbers<[1], [0], [0], [1], [0, 0, 1, 1], [], []>} : vector<8x32xf32>, vector<32x128xf32>, vector<8x128xf32> -> vector<8x128xf32>
    %cst_58 = arith.constant dense<0.000000e+00> : vector<8x128xf32>
    %261 = tpu.matmul %259, %9, %cst_58 {dimension_numbers = #tpu.dot_dimension_numbers<[1], [0], [0], [1], [0, 0, 1, 1], [], []>} : vector<8x32xf32>, vector<32x128xf32>, vector<8x128xf32> -> vector<8x128xf32>
    %c8_i32_59 = arith.constant 8 : i32
    %262 = arith.muli %c6_i32, %c8_i32_59 : i32
    %263 = arith.index_cast %262 : i32 to index
    %c0_60 = arith.constant 0 : index
    %264 = vector.load %arg11[%263, %c0_60] : memref<64x128xf32, #tpu.memory_space<vmem>>, vector<8x128xf32>
    %265 = arith.addf %264, %260 : vector<8x128xf32>
    %266 = vector.extract_strided_slice %265 {offsets = [0, 0], sizes = [8, 96], strides = [1, 1]} : vector<8x128xf32> to vector<8x96xf32>
    %267 = arith.negf %266 : vector<8x96xf32>
    %268 = math.exp %267 : vector<8x96xf32>
    %cst_61 = arith.constant 1.000000e+00 : f32
    %269 = vector.broadcast %cst_61 : f32 to vector<8x96xf32>
    %270 = arith.addf %269, %268 : vector<8x96xf32>
    %271 = arith.divf %269, %270 : vector<8x96xf32>
    %272 = vector.extract_strided_slice %265 {offsets = [0, 96], sizes = [8, 32], strides = [1, 1]} : vector<8x128xf32> to vector<8x32xf32>
    %273 = math.tanh %272 : vector<8x32xf32>
    %274 = vector.extract_strided_slice %271 {offsets = [0, 0], sizes = [8, 32], strides = [1, 1]} : vector<8x96xf32> to vector<8x32xf32>
    %275 = vector.extract_strided_slice %271 {offsets = [0, 32], sizes = [8, 32], strides = [1, 1]} : vector<8x96xf32> to vector<8x32xf32>
    %276 = vector.extract_strided_slice %271 {offsets = [0, 64], sizes = [8, 32], strides = [1, 1]} : vector<8x96xf32> to vector<8x32xf32>
    %277 = arith.mulf %275, %238 : vector<8x32xf32>
    %278 = arith.mulf %274, %273 : vector<8x32xf32>
    %279 = arith.addf %277, %278 : vector<8x32xf32>
    %280 = math.tanh %279 : vector<8x32xf32>
    %281 = arith.mulf %276, %280 : vector<8x32xf32>
    %cst_62 = arith.constant dense<0.000000e+00> : vector<8x128xf32>
    %282 = tpu.matmul %281, %8, %cst_62 {dimension_numbers = #tpu.dot_dimension_numbers<[1], [0], [0], [1], [0, 0, 1, 1], [], []>} : vector<8x32xf32>, vector<32x128xf32>, vector<8x128xf32> -> vector<8x128xf32>
    %283 = arith.addf %282, %261 : vector<8x128xf32>
    %284 = arith.addf %283, %12 : vector<8x128xf32>
    %285 = vector.extract_strided_slice %284 {offsets = [0, 0], sizes = [8, 96], strides = [1, 1]} : vector<8x128xf32> to vector<8x96xf32>
    %286 = arith.negf %285 : vector<8x96xf32>
    %287 = math.exp %286 : vector<8x96xf32>
    %cst_63 = arith.constant 1.000000e+00 : f32
    %288 = vector.broadcast %cst_63 : f32 to vector<8x96xf32>
    %289 = arith.addf %288, %287 : vector<8x96xf32>
    %290 = arith.divf %288, %289 : vector<8x96xf32>
    %291 = vector.extract_strided_slice %284 {offsets = [0, 96], sizes = [8, 32], strides = [1, 1]} : vector<8x128xf32> to vector<8x32xf32>
    %292 = math.tanh %291 : vector<8x32xf32>
    %293 = vector.extract_strided_slice %290 {offsets = [0, 0], sizes = [8, 32], strides = [1, 1]} : vector<8x96xf32> to vector<8x32xf32>
    %294 = vector.extract_strided_slice %290 {offsets = [0, 32], sizes = [8, 32], strides = [1, 1]} : vector<8x96xf32> to vector<8x32xf32>
    %295 = vector.extract_strided_slice %290 {offsets = [0, 64], sizes = [8, 32], strides = [1, 1]} : vector<8x96xf32> to vector<8x32xf32>
    %296 = arith.mulf %294, %257 : vector<8x32xf32>
    %297 = arith.mulf %293, %292 : vector<8x32xf32>
    %298 = arith.addf %296, %297 : vector<8x32xf32>
    %299 = math.tanh %298 : vector<8x32xf32>
    %300 = arith.mulf %295, %299 : vector<8x32xf32>
    %c7_i32 = arith.constant 7 : i32
    %cst_64 = arith.constant dense<0.000000e+00> : vector<8x128xf32>
    %301 = tpu.matmul %281, %7, %cst_64 {dimension_numbers = #tpu.dot_dimension_numbers<[1], [0], [0], [1], [0, 0, 1, 1], [], []>} : vector<8x32xf32>, vector<32x128xf32>, vector<8x128xf32> -> vector<8x128xf32>
    %cst_65 = arith.constant dense<0.000000e+00> : vector<8x128xf32>
    %302 = tpu.matmul %300, %9, %cst_65 {dimension_numbers = #tpu.dot_dimension_numbers<[1], [0], [0], [1], [0, 0, 1, 1], [], []>} : vector<8x32xf32>, vector<32x128xf32>, vector<8x128xf32> -> vector<8x128xf32>
    %c8_i32_66 = arith.constant 8 : i32
    %303 = arith.muli %c7_i32, %c8_i32_66 : i32
    %304 = arith.index_cast %303 : i32 to index
    %c0_67 = arith.constant 0 : index
    %305 = vector.load %arg11[%304, %c0_67] : memref<64x128xf32, #tpu.memory_space<vmem>>, vector<8x128xf32>
    %306 = arith.addf %305, %301 : vector<8x128xf32>
    %307 = vector.extract_strided_slice %306 {offsets = [0, 0], sizes = [8, 96], strides = [1, 1]} : vector<8x128xf32> to vector<8x96xf32>
    %308 = arith.negf %307 : vector<8x96xf32>
    %309 = math.exp %308 : vector<8x96xf32>
    %cst_68 = arith.constant 1.000000e+00 : f32
    %310 = vector.broadcast %cst_68 : f32 to vector<8x96xf32>
    %311 = arith.addf %310, %309 : vector<8x96xf32>
    %312 = arith.divf %310, %311 : vector<8x96xf32>
    %313 = vector.extract_strided_slice %306 {offsets = [0, 96], sizes = [8, 32], strides = [1, 1]} : vector<8x128xf32> to vector<8x32xf32>
    %314 = math.tanh %313 : vector<8x32xf32>
    %315 = vector.extract_strided_slice %312 {offsets = [0, 0], sizes = [8, 32], strides = [1, 1]} : vector<8x96xf32> to vector<8x32xf32>
    %316 = vector.extract_strided_slice %312 {offsets = [0, 32], sizes = [8, 32], strides = [1, 1]} : vector<8x96xf32> to vector<8x32xf32>
    %317 = vector.extract_strided_slice %312 {offsets = [0, 64], sizes = [8, 32], strides = [1, 1]} : vector<8x96xf32> to vector<8x32xf32>
    %318 = arith.mulf %316, %279 : vector<8x32xf32>
    %319 = arith.mulf %315, %314 : vector<8x32xf32>
    %320 = arith.addf %318, %319 : vector<8x32xf32>
    %321 = math.tanh %320 : vector<8x32xf32>
    %322 = arith.mulf %317, %321 : vector<8x32xf32>
    %cst_69 = arith.constant dense<0.000000e+00> : vector<8x128xf32>
    %323 = tpu.matmul %322, %8, %cst_69 {dimension_numbers = #tpu.dot_dimension_numbers<[1], [0], [0], [1], [0, 0, 1, 1], [], []>} : vector<8x32xf32>, vector<32x128xf32>, vector<8x128xf32> -> vector<8x128xf32>
    %324 = arith.addf %323, %302 : vector<8x128xf32>
    %325 = arith.addf %324, %12 : vector<8x128xf32>
    %326 = vector.extract_strided_slice %325 {offsets = [0, 0], sizes = [8, 96], strides = [1, 1]} : vector<8x128xf32> to vector<8x96xf32>
    %327 = arith.negf %326 : vector<8x96xf32>
    %328 = math.exp %327 : vector<8x96xf32>
    %cst_70 = arith.constant 1.000000e+00 : f32
    %329 = vector.broadcast %cst_70 : f32 to vector<8x96xf32>
    %330 = arith.addf %329, %328 : vector<8x96xf32>
    %331 = arith.divf %329, %330 : vector<8x96xf32>
    %332 = vector.extract_strided_slice %325 {offsets = [0, 96], sizes = [8, 32], strides = [1, 1]} : vector<8x128xf32> to vector<8x32xf32>
    %333 = math.tanh %332 : vector<8x32xf32>
    %334 = vector.extract_strided_slice %331 {offsets = [0, 0], sizes = [8, 32], strides = [1, 1]} : vector<8x96xf32> to vector<8x32xf32>
    %335 = vector.extract_strided_slice %331 {offsets = [0, 32], sizes = [8, 32], strides = [1, 1]} : vector<8x96xf32> to vector<8x32xf32>
    %336 = vector.extract_strided_slice %331 {offsets = [0, 64], sizes = [8, 32], strides = [1, 1]} : vector<8x96xf32> to vector<8x32xf32>
    %337 = arith.mulf %335, %298 : vector<8x32xf32>
    %338 = arith.mulf %334, %333 : vector<8x32xf32>
    %339 = arith.addf %337, %338 : vector<8x32xf32>
    %340 = math.tanh %339 : vector<8x32xf32>
    %341 = arith.mulf %336, %340 : vector<8x32xf32>
    %c8_i32_71 = arith.constant 8 : i32
    %c0_72 = arith.constant 0 : index
    %c0_73 = arith.constant 0 : index
    %342 = vector.load %arg8[%c0_72, %c0_73] : memref<32x128xf32, #tpu.memory_space<vmem>>, vector<32x128xf32>
    %cst_74 = arith.constant dense<0.000000e+00> : vector<8x128xf32>
    %343 = tpu.matmul %341, %342, %cst_74 {dimension_numbers = #tpu.dot_dimension_numbers<[1], [0], [0], [1], [0, 0, 1, 1], [], []>} : vector<8x32xf32>, vector<32x128xf32>, vector<8x128xf32> -> vector<8x128xf32>
    %c0_75 = arith.constant 0 : index
    %c0_76 = arith.constant 0 : index
    %344 = vector.load %arg9[%c0_75, %c0_76] : memref<1x128xf32, #tpu.memory_space<vmem>>, vector<1x128xf32>
    %345 = vector.broadcast %344 : vector<1x128xf32> to vector<8x128xf32>
    %346 = arith.addf %343, %345 : vector<8x128xf32>
    %c0_77 = arith.constant 0 : index
    %c0_78 = arith.constant 0 : index
    %347 = vector.load %arg10[%c0_77, %c0_78] : memref<8x128xf32, #tpu.memory_space<vmem>>, vector<8x128xf32>
    tpu.vector_store %arg10[%c0_77, %c0_78], %346 {strides = array<i32>} : memref<8x128xf32, #tpu.memory_space<vmem>>, vector<8x128xf32>,
    return
  }
  func.func @transform_0(%arg0: i32) -> (i32, i32) {
    %c0_i32 = arith.constant 0 : i32
    %c0_i32_0 = arith.constant 0 : i32
    %c0_i32_1 = arith.constant 0 : i32
    return %c0_i32, %c0_i32_0 : i32, i32
  }
  func.func @transform_1(%arg0: i32) -> (i32, i32) {
    %c0_i32 = arith.constant 0 : i32
    %c0_i32_0 = arith.constant 0 : i32
    %c0_i32_1 = arith.constant 0 : i32
    return %c0_i32, %c0_i32_0 : i32, i32
  }
  func.func @transform_2(%arg0: i32) -> (i32, i32) {
    %c0_i32 = arith.constant 0 : i32
    %c0_i32_0 = arith.constant 0 : i32
    %c0_i32_1 = arith.constant 0 : i32
    return %c0_i32, %c0_i32_0 : i32, i32
  }
  func.func @transform_3(%arg0: i32) -> (i32, i32) {
    %c0_i32 = arith.constant 0 : i32
    %c0_i32_0 = arith.constant 0 : i32
    %c0_i32_1 = arith.constant 0 : i32
    return %c0_i32, %c0_i32_0 : i32, i32
  }
  func.func @transform_4(%arg0: i32) -> (i32, i32) {
    %c0_i32 = arith.constant 0 : i32
    %c0_i32_0 = arith.constant 0 : i32
    %c0_i32_1 = arith.constant 0 : i32
    return %c0_i32, %c0_i32_0 : i32, i32
  }
  func.func @transform_5(%arg0: i32) -> (i32, i32) {
    %c0_i32 = arith.constant 0 : i32
    %c0_i32_0 = arith.constant 0 : i32
    %c0_i32_1 = arith.constant 0 : i32
    return %c0_i32, %c0_i32_0 : i32, i32
  }
  func.func @transform_6(%arg0: i32) -> (i32, i32) {
    %c0_i32 = arith.constant 0 : i32
    %c0_i32_0 = arith.constant 0 : i32
    %c0_i32_1 = arith.constant 0 : i32
    return %c0_i32, %c0_i32_0 : i32, i32
  }
  func.func @transform_7(%arg0: i32) -> (i32, i32) {
    %c0_i32 = arith.constant 0 : i32
    %c0_i32_0 = arith.constant 0 : i32
    %c0_i32_1 = arith.constant 0 : i32
    return %c0_i32, %c0_i32_0 : i32, i32
  }
  func.func @transform_8(%arg0: i32) -> (i32, i32) {
    %c0_i32 = arith.constant 0 : i32
    %c0_i32_0 = arith.constant 0 : i32
    %c0_i32_1 = arith.constant 0 : i32
    return %c0_i32, %c0_i32_0 : i32, i32
  }
  func.func @transform_9(%arg0: i32) -> (i32, i32) {
    %c0_i32 = arith.constant 0 : i32
    %c0_i32_0 = arith.constant 0 : i32
    %c0_i32_1 = arith.constant 0 : i32
    return %c0_i32, %c0_i32_0 : i32, i32
  }
}

</mosaic_0001>

<llo_original>
// kernel: tpu_custom_call.1
$region0: #{tpu_custom_call.1}
  #allocation0 [shape = 'u32[]', space=smem, size = 0x4, offset = 0x4, fixed_abs, tag = 'smem constant byte address 0x4 - core index']
  #allocation1 [shape = 'u32[144,128]{1,0:T(1,128)}', space=vmem, size = 0x12000, scoped, tag = 'internal scratch']
  #allocation2 [shape = 'f32[64,128]{1,0:T(8,128)}', space=vmem, size = 0x8000, scoped, tag = 'scratch operand']
  %s0 = inlined_call_operand.vmem [shape: f32[64,4], index: 0, kind: input, shape index: {}]
  %s1 = inlined_call_operand.vmem [shape: f32[4,128], index: 1, kind: input, shape index: {}]
  %s2 = inlined_call_operand.vmem [shape: f32[32,128], index: 2, kind: input, shape index: {}]
  %s3 = inlined_call_operand.vmem [shape: f32[1,128], index: 3, kind: input, shape index: {}]
  %s4 = inlined_call_operand.vmem [shape: f32[32,128], index: 4, kind: input, shape index: {}]
  %s5 = inlined_call_operand.hbm [shape: f32[32,128], index: 5, kind: input, shape index: {}]
  %s6 = inlined_call_operand.vmem [shape: f32[1,128], index: 6, kind: input, shape index: {}]
  %s7 = inlined_call_operand.hbm [shape: f32[32,128], index: 7, kind: input, shape index: {}]
  %s8 = inlined_call_operand.vmem [shape: f32[1,128], index: 8, kind: input, shape index: {}]
  %s9 = inlined_call_operand.hbm [shape: f32[8,128], index: 9, kind: output, shape index: {}]
  %s10 = sld [smem:[#allocation0]]
  $region54: #{tpu_custom_call.1} parent=0
    _
  %s12 = ssub.s32 1, %s10
  %s13 = scalar_select 0, %s12, %s10
  $region1: #{tpu_custom_call.1} parent=0
    #allocation3 [shape = 'u8[16384]{0}', space=vmem, size = 0x4000, scoped, tag = 'input window, operand 5, single buffered']
    #allocation4 [shape = 's32[1]{0}', space=sflag, size = 0x4, scoped, tag = 'scoped memory for tpu_custom_call.1']
    #allocation5 [shape = 's32[1]{0}', space=sflag, size = 0x4, scoped, tag = 'scoped memory for tpu_custom_call.1']
    #allocation6 [shape = 'u8[16384]{0}', space=vmem, size = 0x4000, scoped, tag = 'input window, operand 7, single buffered']
    #allocation7 [shape = 's32[1]{0}', space=sflag, size = 0x4, scoped, tag = 'scoped memory for tpu_custom_call.1']
    #allocation8 [shape = 'u8[4096]{0}', space=vmem, size = 0x1000, scoped, tag = 'output window, operand 0, single buffered']
    %14 = vsyncpa [#allocation4], 0
    %15 = vsyncpa [#allocation7], 0
    %16 = vsyncpa [#allocation5], 0
    // Predicated region
    $region2: #{tpu_custom_call.1} parent=1 // pred_check
      _
    $region3: #{tpu_custom_call.1} parent=1 // pred_check_branch
      %18 = sbr.rel (0) target = $region5
    $region4: #{tpu_custom_call.1} parent=1 // pred_region
      _
    $region5: #{tpu_custom_call.1} parent=1 // pred_fallthru
      _
    // Predicated region
    $region6: #{tpu_custom_call.1} parent=1 // pred_check
      _
    $region7: #{tpu_custom_call.1} parent=1 // pred_check_branch
      %20 = sbr.rel (0) target = $region9
    $region8: #{tpu_custom_call.1} parent=1 // pred_region
      _
    $region9: #{tpu_custom_call.1} parent=1 // pred_fallthru
      _
    // Predicated region
    $region10: #{tpu_custom_call.1} parent=1 // pred_check
      _
    $region11: #{tpu_custom_call.1} parent=1 // pred_check_branch
      %22 = sbr.rel (0) target = $region13
    $region12: #{tpu_custom_call.1} parent=1 // pred_region
      _
    $region13: #{tpu_custom_call.1} parent=1 // pred_fallthru
      _
    // Predicated region
    $region14: #{tpu_custom_call.1} parent=1 // pred_check
      _
    $region15: #{tpu_custom_call.1} parent=1 // pred_check_branch
      %24 = sbr.rel (0) target = $region17
    $region16: #{tpu_custom_call.1} parent=1 // pred_region
      _
    $region17: #{tpu_custom_call.1} parent=1 // pred_fallthru
      _
    // Predicated region
    $region18: #{tpu_custom_call.1} parent=1 // pred_check
      _
    $region19: #{tpu_custom_call.1} parent=1 // pred_check_branch
      %26 = sbr.rel (0) target = $region21
    $region20: #{tpu_custom_call.1} parent=1 // pred_region
      _
    $region21: #{tpu_custom_call.1} parent=1 // pred_fallthru
      _
    // Predicated region
    $region22: #{tpu_custom_call.1} parent=1 // pred_check
      _
    $region23: #{tpu_custom_call.1} parent=1 // pred_check_branch
      %28 = sbr.rel (0) target = $region25
    $region24: #{tpu_custom_call.1} parent=1 // pred_region
      %s30 = ssub.s32 512, 512
      %31 = vsyncadd [#allocation4], %s30
      %s32 = sshll.u32 [#allocation3], 4
      %s33 = int_to_ptr.vmem [resolvable:$true] %s32
      %38 = dma.hbm_to_vmem [thread:$0]  %s5, 512, %s33, [#allocation4], 128, 128, 8
    $region25: #{tpu_custom_call.1} parent=1 // pred_fallthru
      _
    // Predicated region
    $region26: #{tpu_custom_call.1} parent=1 // pred_check
      _
    $region27: #{tpu_custom_call.1} parent=1 // pred_check_branch
      %40 = sbr.rel (0) target = $region29
    $region28: #{tpu_custom_call.1} parent=1 // pred_region
      _
    $region29: #{tpu_custom_call.1} parent=1 // pred_fallthru
      _
    // Predicated region
    $region30: #{tpu_custom_call.1} parent=1 // pred_check
      _
    $region31: #{tpu_custom_call.1} parent=1 // pred_check_branch
      %42 = sbr.rel (0) target = $region33
    $region32: #{tpu_custom_call.1} parent=1 // pred_region
      %s44 = ssub.s32 512, 512
      %45 = vsyncadd [#allocation7], %s44
      %s46 = sshll.u32 [#allocation6], 4
      %s47 = int_to_ptr.vmem [resolvable:$true] %s46
      %52 = dma.hbm_to_vmem [thread:$0]  %s7, 512, %s47, [#allocation7], 128, 128, 8
    $region33: #{tpu_custom_call.1} parent=1 // pred_fallthru
      _
    // Predicated region
    $region34: #{tpu_custom_call.1} parent=1 // pred_check
      _
    $region35: #{tpu_custom_call.1} parent=1 // pred_check_branch
      %54 = sbr.rel (0) target = $region37
    $region36: #{tpu_custom_call.1} parent=1 // pred_region
      _
    $region37: #{tpu_custom_call.1} parent=1 // pred_fallthru
      _
    // Predicated region
    $region38: #{tpu_custom_call.1} parent=1 // pred_check
      _
    $region39: #{tpu_custom_call.1} parent=1 // pred_check_branch
      %56 = sbr.rel (0) target = $region41
    $region40: #{tpu_custom_call.1} parent=1 // pred_region
      %57 = dma.done [#allocation4], 512
    $region41: #{tpu_custom_call.1} parent=1 // pred_fallthru
      _
    // Predicated region
    $region42: #{tpu_custom_call.1} parent=1 // pred_check
      _
    $region43: #{tpu_custom_call.1} parent=1 // pred_check_branch
      %59 = sbr.rel (0) target = $region45
    $region44: #{tpu_custom_call.1} parent=1 // pred_region
      %60 = dma.done [#allocation7], 512
    $region45: #{tpu_custom_call.1} parent=1 // pred_fallthru
      _
    %v61 = vld [vmem:[%s0] sm:$0xff]
    %v62 = vld [vmem:[%s0 + $0x8] sm:$0xff]
    %v63 = vld [vmem:[%s0 + $0x10] sm:$0xff]
    %v64 = vld [vmem:[%s0 + $0x18] sm:$0xff]
    %v65 = vld [vmem:[%s0 + $0x20] sm:$0xff]
    %v66 = vld [vmem:[%s0 + $0x28] sm:$0xff]
    %v67 = vld [vmem:[%s0 + $0x30] sm:$0xff]
    %v68 = vld [vmem:[%s0 + $0x38] sm:$0xff]
    %v69 = vld [vmem:[%s1] sm:$0xf]
    %v70 = vld [vmem:[%s3] sm:$0x1]
    %v72 = vlaneseq
    %v73 = vshrl.u32 %v72, 7
    %v74 = vsub.s32 0, %v73
    %v75 = vrot.slane %v70, %v74
    %vm77 = vcmask 31744
    %v79 = vsel %vm77, %v61, 0
    %v82 = vsel %vm77, %v62, 0
    %v85 = vsel %vm77, %v63, 0
    %v88 = vsel %vm77, %v64, 0
    %v91 = vsel %vm77, %v65, 0
    %v94 = vsel %vm77, %v66, 0
    %v97 = vsel %vm77, %v67, 0
    %v100 = vsel %vm77, %v68, 0
    %vm102 = vcmask 1043456
    %v104 = vsel %vm102, %v69, 0
    %106 = vmatprep.subr.mxu0 0.0
    %107 = vmatpush1.msra.mxu0 %v104
    %108 = vmatprep.subr.mxu0 0.0
    %109 = vmatpush1.msra.mxu0 0.0
    %110 = vmatprep.subr.mxu0 0.0
    %111 = vmatpush1.msra.mxu0 0.0
    %112 = vmatprep.subr.mxu0 0.0
    %113 = vmatpush1.msra.mxu0 0.0
    %114 = vmatprep.subr.mxu0 0.0
    %115 = vmatpush1.msra.mxu0 0.0
    %116 = vmatprep.subr.mxu0 0.0
    %117 = vmatpush1.msra.mxu0 0.0
    %118 = vmatprep.subr.mxu0 0.0
    %119 = vmatpush1.msra.mxu0 0.0
    %120 = vmatprep.subr.mxu0 0.0
    %121 = vmatpush1.msra.mxu0 0.0
    %122 = vmatprep.subr.mxu0 0.0
    %123 = vmatpush1.msra.mxu0 0.0
    %124 = vmatprep.subr.mxu0 0.0
    %125 = vmatpush1.msra.mxu0 0.0
    %126 = vmatprep.subr.mxu0 0.0
    %127 = vmatpush1.msra.mxu0 0.0
    %128 = vmatprep.subr.mxu0 0.0
    %129 = vmatpush1.msra.mxu0 0.0
    %130 = vmatprep.subr.mxu0 0.0
    %131 = vmatpush1.msra.mxu0 0.0
    %132 = vmatprep.subr.mxu0 0.0
    %133 = vmatpush1.msra.mxu0 0.0
    %134 = vmatprep.subr.mxu0 0.0
    %135 = vmatpush1.msra.mxu0 0.0
    %136 = vmatprep.subr.mxu0 0.0
    %137 = vmatpush1.msra.mxu0 0.0
    %138 = vmatprep.subr.mxu0 0.0
    %139 = vmatpush1.msra.mxu0 0.0
    %140 = vmatprep.subr.mxu0 0.0
    %141 = vmatpush1.msra.mxu0 0.0
    %142 = vmatprep.subr.mxu0 0.0
    %143 = vmatpush1.msra.mxu0 0.0
    %144 = vmatprep.subr.mxu0 0.0
    %145 = vmatpush1.msra.mxu0 0.0
    %146 = vmatprep.subr.mxu0 0.0
    %147 = vmatpush1.msra.mxu0 0.0
    %148 = vmatprep.subr.mxu0 0.0
    %149 = vmatpush1.msra.mxu0 0.0
    %150 = vmatprep.subr.mxu0 0.0
    %151 = vmatpush1.msra.mxu0 0.0
    %152 = vmatprep.subr.mxu0 0.0
    %153 = vmatpush1.msra.mxu0 0.0
    %154 = vmatprep.subr.mxu0 0.0
    %155 = vmatpush1.msra.mxu0 0.0
    %156 = vmatprep.subr.mxu0 0.0
    %157 = vmatpush1.msra.mxu0 0.0
    %158 = vmatprep.subr.mxu0 0.0
    %159 = vmatpush1.msra.mxu0 0.0
    %160 = vmatprep.subr.mxu0 0.0
    %161 = vmatpush1.msra.mxu0 0.0
    %162 = vmatprep.subr.mxu0 0.0
    %163 = vmatpush1.msra.mxu0 0.0
    %164 = vmatprep.subr.mxu0 0.0
    %165 = vmatpush1.msra.mxu0 0.0
    %166 = vmatprep.subr.mxu0 0.0
    %167 = vmatpush1.msra.mxu0 0.0
    %168 = vmatprep.subr.mxu0 0.0
    %169 = vmatpush1.msra.mxu0 0.0
    %170 = vmatprep.mubr.f32.mxu0 0.0
    %171 = vmatmul.mubr.f32.gmra.mrb[0].mxu0 %v79
    %v172 = vpop.f32.mrb[0].mxu0
    %v173 = vadd.f32 %v75, %v172
    %v174 = vpop.f32.mrb[0].mxu0
    %175 = vmatprep.mubr.f32.mxu0 0.0
    %176 = vmatmul.mubr.f32.gmra.mrb[0].mxu0 %v82
    %v177 = vpop.f32.mrb[0].mxu0
    %v178 = vadd.f32 %v75, %v177
    %v179 = vpop.f32.mrb[0].mxu0
    %180 = vmatprep.mubr.f32.mxu0 0.0
    %181 = vmatmul.mubr.f32.gmra.mrb[0].mxu0 %v85
    %v182 = vpop.f32.mrb[0].mxu0
    %v183 = vadd.f32 %v75, %v182
    %v184 = vpop.f32.mrb[0].mxu0
    %185 = vmatprep.mubr.f32.mxu0 0.0
    %186 = vmatmul.mubr.f32.gmra.mrb[0].mxu0 %v88
    %v187 = vpop.f32.mrb[0].mxu0
    %v188 = vadd.f32 %v75, %v187
    %v189 = vpop.f32.mrb[0].mxu0
    %190 = vmatprep.mubr.f32.mxu0 0.0
    %191 = vmatmul.mubr.f32.gmra.mrb[0].mxu0 %v91
    %v192 = vpop.f32.mrb[0].mxu0
    %v193 = vadd.f32 %v75, %v192
    %v194 = vpop.f32.mrb[0].mxu0
    %195 = vmatprep.mubr.f32.mxu0 0.0
    %196 = vmatmul.mubr.f32.gmra.mrb[0].mxu0 %v94
    %v197 = vpop.f32.mrb[0].mxu0
    %v198 = vadd.f32 %v75, %v197
    %v199 = vpop.f32.mrb[0].mxu0
    %200 = vmatprep.mubr.f32.mxu0 0.0
    %201 = vmatmul.mubr.f32.gmra.mrb[0].mxu0 %v97
    %v202 = vpop.f32.mrb[0].mxu0
    %v203 = vadd.f32 %v75, %v202
    %v204 = vpop.f32.mrb[0].mxu0
    %205 = vmatprep.mubr.f32.mxu0 0.0
    %206 = vmatmul.mubr.f32.gmra.mrb[0].mxu0 %v100
    %v207 = vpop.f32.mrb[0].mxu0
    %v208 = vadd.f32 %v75, %v207
    %v209 = vpop.f32.mrb[0].mxu0
    %210 = vdwg.mxu0
    %211 = vst [vmem:[#allocation2] sm:$0xff] %v173
    %212 = vst [vmem:[#allocation2 + $0x8] sm:$0xff] %v178
    %213 = vst [vmem:[#allocation2 + $0x10] sm:$0xff] %v183
    %214 = vst [vmem:[#allocation2 + $0x18] sm:$0xff] %v188
    %215 = vst [vmem:[#allocation2 + $0x20] sm:$0xff] %v193
    %216 = vst [vmem:[#allocation2 + $0x28] sm:$0xff] %v198
    %217 = vst [vmem:[#allocation2 + $0x30] sm:$0xff] %v203
    %218 = vst [vmem:[#allocation2 + $0x38] sm:$0xff] %v208
    %v219 = vld [vmem:[%s2] sm:$0xff]
    %v220 = vld [vmem:[%s2 + $0x8] sm:$0xff]
    %v221 = vld [vmem:[%s2 + $0x10] sm:$0xff]
    %v222 = vld [vmem:[%s2 + $0x18] sm:$0xff]
    %v223 = vld [vmem:[%s4] sm:$0xff]
    %v224 = vld [vmem:[%s4 + $0x8] sm:$0xff]
    %v225 = vld [vmem:[%s4 + $0x10] sm:$0xff]
    %v226 = vld [vmem:[%s4 + $0x18] sm:$0xff]
    %v227 = vld [vmem:[#allocation3] sm:$0xff]
    %v228 = vld [vmem:[#allocation3 + $0x8] sm:$0xff]
    %v229 = vld [vmem:[#allocation3 + $0x10] sm:$0xff]
    %v230 = vld [vmem:[#allocation3 + $0x18] sm:$0xff]
    %v231 = vld [vmem:[%s6] sm:$0x1]
    %v233 = vlaneseq
    %v234 = vshrl.u32 %v233, 7
    %v235 = vsub.s32 0, %v234
    %v236 = vrot.slane %v231, %v235
    %vm238 = vcmask 261120
    %v240 = vsel %vm238, 0.0, 0
    %242 = vmatprep.subr.mxu0 0.0
    %243 = vmatpush1.msra.mxu0 %v219
    %244 = vmatprep.subr.mxu0 0.0
    %245 = vmatpush1.msra.mxu0 %v220
    %246 = vmatprep.subr.mxu0 0.0
    %247 = vmatpush1.msra.mxu0 %v221
    %248 = vmatprep.subr.mxu0 0.0
    %249 = vmatpush1.msra.mxu0 %v222
    %250 = vmatprep.subr.mxu0 0.0
    %251 = vmatpush1.msra.mxu0 0.0
    %252 = vmatprep.subr.mxu0 0.0
    %253 = vmatpush1.msra.mxu0 0.0
    %254 = vmatprep.subr.mxu0 0.0
    %255 = vmatpush1.msra.mxu0 0.0
    %256 = vmatprep.subr.mxu0 0.0
    %257 = vmatpush1.msra.mxu0 0.0
    %258 = vmatprep.subr.mxu0 0.0
    %259 = vmatpush1.msra.mxu0 0.0
    %260 = vmatprep.subr.mxu0 0.0
    %261 = vmatpush1.msra.mxu0 0.0
    %262 = vmatprep.subr.mxu0 0.0
    %263 = vmatpush1.msra.mxu0 0.0
    %264 = vmatprep.subr.mxu0 0.0
    %265 = vmatpush1.msra.mxu0 0.0
    %266 = vmatprep.subr.mxu0 0.0
    %267 = vmatpush1.msra.mxu0 0.0
    %268 = vmatprep.subr.mxu0 0.0
    %269 = vmatpush1.msra.mxu0 0.0
    %270 = vmatprep.subr.mxu0 0.0
    %271 = vmatpush1.msra.mxu0 0.0
    %272 = vmatprep.subr.mxu0 0.0
    %273 = vmatpush1.msra.mxu0 0.0
    %274 = vmatprep.subr.mxu0 0.0
    %275 = vmatpush1.msra.mxu0 0.0
    %276 = vmatprep.subr.mxu0 0.0
    %277 = vmatpush1.msra.mxu0 0.0
    %278 = vmatprep.subr.mxu0 0.0
    %279 = vmatpush1.msra.mxu0 0.0
    %280 = vmatprep.subr.mxu0 0.0
    %281 = vmatpush1.msra.mxu0 0.0
    %282 = vmatprep.subr.mxu0 0.0
    %283 = vmatpush1.msra.mxu0 0.0
    %284 = vmatprep.subr.mxu0 0.0
    %285 = vmatpush1.msra.mxu0 0.0
    %286 = vmatprep.subr.mxu0 0.0
    %287 = vmatpush1.msra.mxu0 0.0
    %288 = vmatprep.subr.mxu0 0.0
    %289 = vmatpush1.msra.mxu0 0.0
    %290 = vmatprep.subr.mxu0 0.0
    %291 = vmatpush1.msra.mxu0 0.0
    %292 = vmatprep.subr.mxu0 0.0
    %293 = vmatpush1.msra.mxu0 0.0
    %294 = vmatprep.subr.mxu0 0.0
    %295 = vmatpush1.msra.mxu0 0.0
    %296 = vmatprep.subr.mxu0 0.0
    %297 = vmatpush1.msra.mxu0 0.0
    %298 = vmatprep.subr.mxu0 0.0
    %299 = vmatpush1.msra.mxu0 0.0
    %300 = vmatprep.subr.mxu0 0.0
    %301 = vmatpush1.msra.mxu0 0.0
    %302 = vmatprep.subr.mxu0 0.0
    %303 = vmatpush1.msra.mxu0 0.0
    %304 = vmatprep.subr.mxu0 0.0
    %305 = vmatpush1.msra.mxu0 0.0
    %306 = vmatprep.mubr.f32.mxu0 0.0
    %307 = vmatmul.mubr.f32.gmra.mrb[0].mxu0 %v240
    %v308 = vpop.f32.mrb[0].mxu0
    %v309 = vadd.f32 0.0, %v308
    %v310 = vpop.f32.mrb[0].mxu0
    %311 = vdwg.mxu0
    %312 = vmatprep.subr.mxu0 0.0
    %313 = vmatpush1.msra.mxu0 %v227
    %314 = vmatprep.subr.mxu0 0.0
    %315 = vmatpush1.msra.mxu0 %v228
    %316 = vmatprep.subr.mxu0 0.0
    %317 = vmatpush1.msra.mxu0 %v229
    %318 = vmatprep.subr.mxu0 0.0
    %319 = vmatpush1.msra.mxu0 %v230
    %320 = vmatprep.subr.mxu0 0.0
    %321 = vmatpush1.msra.mxu0 0.0
    %322 = vmatprep.subr.mxu0 0.0
    %323 = vmatpush1.msra.mxu0 0.0
    %324 = vmatprep.subr.mxu0 0.0
    %325 = vmatpush1.msra.mxu0 0.0
    %326 = vmatprep.subr.mxu0 0.0
    %327 = vmatpush1.msra.mxu0 0.0
    %328 = vmatprep.subr.mxu0 0.0
    %329 = vmatpush1.msra.mxu0 0.0
    %330 = vmatprep.subr.mxu0 0.0
    %331 = vmatpush1.msra.mxu0 0.0
    %332 = vmatprep.subr.mxu0 0.0
    %333 = vmatpush1.msra.mxu0 0.0
    %334 = vmatprep.subr.mxu0 0.0
    %335 = vmatpush1.msra.mxu0 0.0
    %336 = vmatprep.subr.mxu0 0.0
    %337 = vmatpush1.msra.mxu0 0.0
    %338 = vmatprep.subr.mxu0 0.0
    %339 = vmatpush1.msra.mxu0 0.0
    %340 = vmatprep.subr.mxu0 0.0
    %341 = vmatpush1.msra.mxu0 0.0
    %342 = vmatprep.subr.mxu0 0.0
    %343 = vmatpush1.msra.mxu0 0.0
    %344 = vmatprep.subr.mxu0 0.0
    %345 = vmatpush1.msra.mxu0 0.0
    %346 = vmatprep.subr.mxu0 0.0
    %347 = vmatpush1.msra.mxu0 0.0
    %348 = vmatprep.subr.mxu0 0.0
    %349 = vmatpush1.msra.mxu0 0.0
    %350 = vmatprep.subr.mxu0 0.0
    %351 = vmatpush1.msra.mxu0 0.0
    %352 = vmatprep.subr.mxu0 0.0
    %353 = vmatpush1.msra.mxu0 0.0
    %354 = vmatprep.subr.mxu0 0.0
    %355 = vmatpush1.msra.mxu0 0.0
    %356 = vmatprep.subr.mxu0 0.0
    %357 = vmatpush1.msra.mxu0 0.0
    %358 = vmatprep.subr.mxu0 0.0
    %359 = vmatpush1.msra.mxu0 0.0
    %360 = vmatprep.subr.mxu0 0.0
    %361 = vmatpush1.msra.mxu0 0.0
    %362 = vmatprep.subr.mxu0 0.0
    %363 = vmatpush1.msra.mxu0 0.0
    %364 = vmatprep.subr.mxu0 0.0
    %365 = vmatpush1.msra.mxu0 0.0
    %366 = vmatprep.subr.mxu0 0.0
    %367 = vmatpush1.msra.mxu0 0.0
    %368 = vmatprep.subr.mxu0 0.0
    %369 = vmatpush1.msra.mxu0 0.0
    %370 = vmatprep.subr.mxu0 0.0
    %371 = vmatpush1.msra.mxu0 0.0
    %372 = vmatprep.subr.mxu0 0.0
    %373 = vmatpush1.msra.mxu0 0.0
    %374 = vmatprep.subr.mxu0 0.0
    %375 = vmatpush1.msra.mxu0 0.0
    %376 = vmatprep.mubr.f32.mxu0 0.0
    %377 = vmatmul.mubr.f32.gmra.mrb[0].mxu0 %v240
    %v378 = vpop.f32.mrb[0].mxu0
    %v379 = vadd.f32 0.0, %v378
    %v380 = vpop.f32.mrb[0].mxu0
    %381 = vdwg.mxu0
    %v382 = vld [vmem:[#allocation2] sm:$0xff]
    %v383 = vadd.f32 %v382, %v309
    %v384 = vxor.u32 %v383, 2147483648
    %v385 = vmul.f32 %v384, 1.442695
    %v386 = vpow.pop %v385
    %v387 = vadd.f32 %v386, 1.0
    %v388 = vrcp.pop %v387
    %v389 = vmul.f32 1.0, %v388
    %v390 = vtanh.pop %v383
    %v391 = vmul.f32 %v389, 0.0
    %393 = vrot.lane.b32.xlu0 %v390, 32
    %v394 = vpop.permute.xlu0 %393
    %v396 = vmul.f32 %v389, %v394
    %398 = vrot.lane.b32.xlu0 %v396, 32
    %v399 = vpop.permute.xlu0 %398
    %v401 = vadd.f32 %v391, %v399
    %v402 = vtanh.pop %v401
    %404 = vrot.lane.b32.xlu0 %v402, 32
    %v405 = vpop.permute.xlu0 %404
    %v407 = vmul.f32 %v389, %v405
    %409 = vrot.lane.b32.xlu0 %v407, 64
    %v410 = vpop.permute.xlu0 %409
    %v411 = vsel %vm238, %v410, 0
    %413 = vmatprep.subr.mxu0 0.0
    %414 = vmatpush1.msra.mxu0 %v223
    %415 = vmatprep.subr.mxu0 0.0
    %416 = vmatpush1.msra.mxu0 %v224
    %417 = vmatprep.subr.mxu0 0.0
    %418 = vmatpush1.msra.mxu0 %v225
    %419 = vmatprep.subr.mxu0 0.0
    %420 = vmatpush1.msra.mxu0 %v226
    %421 = vmatprep.subr.mxu0 0.0
    %422 = vmatpush1.msra.mxu0 0.0
    %423 = vmatprep.subr.mxu0 0.0
    %424 = vmatpush1.msra.mxu0 0.0
    %425 = vmatprep.subr.mxu0 0.0
    %426 = vmatpush1.msra.mxu0 0.0
    %427 = vmatprep.subr.mxu0 0.0
    %428 = vmatpush1.msra.mxu0 0.0
    %429 = vmatprep.subr.mxu0 0.0
    %430 = vmatpush1.msra.mxu0 0.0
    %431 = vmatprep.subr.mxu0 0.0
    %432 = vmatpush1.msra.mxu0 0.0
    %433 = vmatprep.subr.mxu0 0.0
    %434 = vmatpush1.msra.mxu0 0.0
    %435 = vmatprep.subr.mxu0 0.0
    %436 = vmatpush1.msra.mxu0 0.0
    %437 = vmatprep.subr.mxu0 0.0
    %438 = vmatpush1.msra.mxu0 0.0
    %439 = vmatprep.subr.mxu0 0.0
    %440 = vmatpush1.msra.mxu0 0.0
    %441 = vmatprep.subr.mxu0 0.0
    %442 = vmatpush1.msra.mxu0 0.0
    %443 = vmatprep.subr.mxu0 0.0
    %444 = vmatpush1.msra.mxu0 0.0
    %445 = vmatprep.subr.mxu0 0.0
    %446 = vmatpush1.msra.mxu0 0.0
    %447 = vmatprep.subr.mxu0 0.0
    %448 = vmatpush1.msra.mxu0 0.0
    %449 = vmatprep.subr.mxu0 0.0
    %450 = vmatpush1.msra.mxu0 0.0
    %451 = vmatprep.subr.mxu0 0.0
    %452 = vmatpush1.msra.mxu0 0.0
    %453 = vmatprep.subr.mxu0 0.0
    %454 = vmatpush1.msra.mxu0 0.0
    %455 = vmatprep.subr.mxu0 0.0
    %456 = vmatpush1.msra.mxu0 0.0
    %457 = vmatprep.subr.mxu0 0.0
    %458 = vmatpush1.msra.mxu0 0.0
    %459 = vmatprep.subr.mxu0 0.0
    %460 = vmatpush1.msra.mxu0 0.0
    %461 = vmatprep.subr.mxu0 0.0
    %462 = vmatpush1.msra.mxu0 0.0
    %463 = vmatprep.subr.mxu0 0.0
    %464 = vmatpush1.msra.mxu0 0.0
    %465 = vmatprep.subr.mxu0 0.0
    %466 = vmatpush1.msra.mxu0 0.0
    %467 = vmatprep.subr.mxu0 0.0
    %468 = vmatpush1.msra.mxu0 0.0
    %469 = vmatprep.subr.mxu0 0.0
    %470 = vmatpush1.msra.mxu0 0.0
    %471 = vmatprep.subr.mxu0 0.0
    %472 = vmatpush1.msra.mxu0 0.0
    %473 = vmatprep.subr.mxu0 0.0
    %474 = vmatpush1.msra.mxu0 0.0
    %475 = vmatprep.subr.mxu0 0.0
    %476 = vmatpush1.msra.mxu0 0.0
    %477 = vmatprep.mubr.f32.mxu0 0.0
    %478 = vmatmul.mubr.f32.gmra.mrb[0].mxu0 %v411
    %v479 = vpop.f32.mrb[0].mxu0
    %v480 = vadd.f32 %v379, %v479
    %v481 = vpop.f32.mrb[0].mxu0
    %482 = vdwg.mxu0
    %v483 = vadd.f32 %v480, %v236
    %v484 = vxor.u32 %v483, 2147483648
    %v485 = vmul.f32 %v484, 1.442695
    %v486 = vpow.pop %v485
    %v487 = vadd.f32 %v486, 1.0
    %v488 = vrcp.pop %v487
    %v489 = vmul.f32 1.0, %v488
    %v490 = vtanh.pop %v483
    %v491 = vmul.f32 %v489, 0.0
    %493 = vrot.lane.b32.xlu0 %v490, 32
    %v494 = vpop.permute.xlu0 %493
    %v496 = vmul.f32 %v489, %v494
    %498 = vrot.lane.b32.xlu0 %v496, 32
    %v499 = vpop.permute.xlu0 %498
    %v501 = vadd.f32 %v491, %v499
    %v502 = vtanh.pop %v501
    %504 = vrot.lane.b32.xlu0 %v502, 32
    %v505 = vpop.permute.xlu0 %504
    %v507 = vmul.f32 %v489, %v505
    %508 = vmatprep.subr.mxu0 0.0
    %509 = vmatpush1.msra.mxu0 %v219
    %510 = vmatprep.subr.mxu0 0.0
    %511 = vmatpush1.msra.mxu0 %v220
    %512 = vmatprep.subr.mxu0 0.0
    %513 = vmatpush1.msra.mxu0 %v221
    %514 = vmatprep.subr.mxu0 0.0
    %515 = vmatpush1.msra.mxu0 %v222
    %516 = vmatprep.subr.mxu0 0.0
    %517 = vmatpush1.msra.mxu0 0.0
    %518 = vmatprep.subr.mxu0 0.0
    %519 = vmatpush1.msra.mxu0 0.0
    %520 = vmatprep.subr.mxu0 0.0
    %521 = vmatpush1.msra.mxu0 0.0
    %522 = vmatprep.subr.mxu0 0.0
    %523 = vmatpush1.msra.mxu0 0.0
    %524 = vmatprep.subr.mxu0 0.0
    %525 = vmatpush1.msra.mxu0 0.0
    %526 = vmatprep.subr.mxu0 0.0
    %527 = vmatpush1.msra.mxu0 0.0
    %528 = vmatprep.subr.mxu0 0.0
    %529 = vmatpush1.msra.mxu0 0.0
    %530 = vmatprep.subr.mxu0 0.0
    %531 = vmatpush1.msra.mxu0 0.0
    %532 = vmatprep.subr.mxu0 0.0
    %533 = vmatpush1.msra.mxu0 0.0
    %534 = vmatprep.subr.mxu0 0.0
    %535 = vmatpush1.msra.mxu0 0.0
    %536 = vmatprep.subr.mxu0 0.0
    %537 = vmatpush1.msra.mxu0 0.0
    %538 = vmatprep.subr.mxu0 0.0
    %539 = vmatpush1.msra.mxu0 0.0
    %540 = vmatprep.subr.mxu0 0.0
    %541 = vmatpush1.msra.mxu0 0.0
    %542 = vmatprep.subr.mxu0 0.0
    %543 = vmatpush1.msra.mxu0 0.0
    %544 = vmatprep.subr.mxu0 0.0
    %545 = vmatpush1.msra.mxu0 0.0
    %546 = vmatprep.subr.mxu0 0.0
    %547 = vmatpush1.msra.mxu0 0.0
    %548 = vmatprep.subr.mxu0 0.0
    %549 = vmatpush1.msra.mxu0 0.0
    %550 = vmatprep.subr.mxu0 0.0
    %551 = vmatpush1.msra.mxu0 0.0
    %552 = vmatprep.subr.mxu0 0.0
    %553 = vmatpush1.msra.mxu0 0.0
    %554 = vmatprep.subr.mxu0 0.0
    %555 = vmatpush1.msra.mxu0 0.0
    %556 = vmatprep.subr.mxu0 0.0
    %557 = vmatpush1.msra.mxu0 0.0
    %558 = vmatprep.subr.mxu0 0.0
    %559 = vmatpush1.msra.mxu0 0.0
    %560 = vmatprep.subr.mxu0 0.0
    %561 = vmatpush1.msra.mxu0 0.0
    %562 = vmatprep.subr.mxu0 0.0
    %563 = vmatpush1.msra.mxu0 0.0
    %564 = vmatprep.subr.mxu0 0.0
    %565 = vmatpush1.msra.mxu0 0.0
    %566 = vmatprep.subr.mxu0 0.0
    %567 = vmatpush1.msra.mxu0 0.0
    %568 = vmatprep.subr.mxu0 0.0
    %569 = vmatpush1.msra.mxu0 0.0
    %570 = vmatprep.subr.mxu0 0.0
    %571 = vmatpush1.msra.mxu0 0.0
    %572 = vmatprep.mubr.f32.mxu0 0.0
    %573 = vmatmul.mubr.f32.gmra.mrb[0].mxu0 %v411
    %v574 = vpop.f32.mrb[0].mxu0
    %v575 = vadd.f32 0.0, %v574
    %v576 = vpop.f32.mrb[0].mxu0
    %577 = vdwg.mxu0
    %579 = vrot.lane.b32.xlu0 %v507, 64
    %v580 = vpop.permute.xlu0 %579
    %v581 = vsel %vm238, %v580, 0
    %583 = vmatprep.subr.mxu0 0.0
    %584 = vmatpush1.msra.mxu0 %v227
    %585 = vmatprep.subr.mxu0 0.0
    %586 = vmatpush1.msra.mxu0 %v228
    %587 = vmatprep.subr.mxu0 0.0
    %588 = vmatpush1.msra.mxu0 %v229
    %589 = vmatprep.subr.mxu0 0.0
    %590 = vmatpush1.msra.mxu0 %v230
    %591 = vmatprep.subr.mxu0 0.0
    %592 = vmatpush1.msra.mxu0 0.0
    %593 = vmatprep.subr.mxu0 0.0
    %594 = vmatpush1.msra.mxu0 0.0
    %595 = vmatprep.subr.mxu0 0.0
    %596 = vmatpush1.msra.mxu0 0.0
    %597 = vmatprep.subr.mxu0 0.0
    %598 = vmatpush1.msra.mxu0 0.0
    %599 = vmatprep.subr.mxu0 0.0
    %600 = vmatpush1.msra.mxu0 0.0
    %601 = vmatprep.subr.mxu0 0.0
    %602 = vmatpush1.msra.mxu0 0.0
    %603 = vmatprep.subr.mxu0 0.0
    %604 = vmatpush1.msra.mxu0 0.0
    %605 = vmatprep.subr.mxu0 0.0
    %606 = vmatpush1.msra.mxu0 0.0
    %607 = vmatprep.subr.mxu0 0.0
    %608 = vmatpush1.msra.mxu0 0.0
    %609 = vmatprep.subr.mxu0 0.0
    %610 = vmatpush1.msra.mxu0 0.0
    %611 = vmatprep.subr.mxu0 0.0
    %612 = vmatpush1.msra.mxu0 0.0
    %613 = vmatprep.subr.mxu0 0.0
    %614 = vmatpush1.msra.mxu0 0.0
    %615 = vmatprep.subr.mxu0 0.0
    %616 = vmatpush1.msra.mxu0 0.0
    %617 = vmatprep.subr.mxu0 0.0
    %618 = vmatpush1.msra.mxu0 0.0
    %619 = vmatprep.subr.mxu0 0.0
    %620 = vmatpush1.msra.mxu0 0.0
    %621 = vmatprep.subr.mxu0 0.0
    %622 = vmatpush1.msra.mxu0 0.0
    %623 = vmatprep.subr.mxu0 0.0
    %624 = vmatpush1.msra.mxu0 0.0
    %625 = vmatprep.subr.mxu0 0.0
    %626 = vmatpush1.msra.mxu0 0.0
    %627 = vmatprep.subr.mxu0 0.0
    %628 = vmatpush1.msra.mxu0 0.0
    %629 = vmatprep.subr.mxu0 0.0
    %630 = vmatpush1.msra.mxu0 0.0
    %631 = vmatprep.subr.mxu0 0.0
    %632 = vmatpush1.msra.mxu0 0.0
    %633 = vmatprep.subr.mxu0 0.0
    %634 = vmatpush1.msra.mxu0 0.0
    %635 = vmatprep.subr.mxu0 0.0
    %636 = vmatpush1.msra.mxu0 0.0
    %637 = vmatprep.subr.mxu0 0.0
    %638 = vmatpush1.msra.mxu0 0.0
    %639 = vmatprep.subr.mxu0 0.0
    %640 = vmatpush1.msra.mxu0 0.0
    %641 = vmatprep.subr.mxu0 0.0
    %642 = vmatpush1.msra.mxu0 0.0
    %643 = vmatprep.subr.mxu0 0.0
    %644 = vmatpush1.msra.mxu0 0.0
    %645 = vmatprep.subr.mxu0 0.0
    %646 = vmatpush1.msra.mxu0 0.0
    %647 = vmatprep.mubr.f32.mxu0 0.0
    %648 = vmatmul.mubr.f32.gmra.mrb[0].mxu0 %v581
    %v649 = vpop.f32.mrb[0].mxu0
    %v650 = vadd.f32 0.0, %v649
    %v651 = vpop.f32.mrb[0].mxu0
    %652 = vdwg.mxu0
    %v653 = vld [vmem:[#allocation2 + $0x8] sm:$0xff]
    %v654 = vadd.f32 %v653, %v575
    %v655 = vxor.u32 %v654, 2147483648
    %v656 = vmul.f32 %v655, 1.442695
    %v657 = vpow.pop %v656
    %v658 = vadd.f32 %v657, 1.0
    %v659 = vrcp.pop %v658
    %v660 = vmul.f32 1.0, %v659
    %v661 = vtanh.pop %v654
    %v662 = vmul.f32 %v660, %v401
    %664 = vrot.lane.b32.xlu0 %v661, 32
    %v665 = vpop.permute.xlu0 %664
    %v667 = vmul.f32 %v660, %v665
    %669 = vrot.lane.b32.xlu0 %v667, 32
    %v670 = vpop.permute.xlu0 %669
    %v672 = vadd.f32 %v662, %v670
    %v673 = vtanh.pop %v672
    %675 = vrot.lane.b32.xlu0 %v673, 32
    %v676 = vpop.permute.xlu0 %675
    %v678 = vmul.f32 %v660, %v676
    %680 = vrot.lane.b32.xlu0 %v678, 64
    %v681 = vpop.permute.xlu0 %680
    %v682 = vsel %vm238, %v681, 0
    %684 = vmatprep.subr.mxu0 0.0
    %685 = vmatpush1.msra.mxu0 %v223
    %686 = vmatprep.subr.mxu0 0.0
    %687 = vmatpush1.msra.mxu0 %v224
    %688 = vmatprep.subr.mxu0 0.0
    %689 = vmatpush1.msra.mxu0 %v225
    %690 = vmatprep.subr.mxu0 0.0
    %691 = vmatpush1.msra.mxu0 %v226
    %692 = vmatprep.subr.mxu0 0.0
    %693 = vmatpush1.msra.mxu0 0.0
    %694 = vmatprep.subr.mxu0 0.0
    %695 = vmatpush1.msra.mxu0 0.0
    %696 = vmatprep.subr.mxu0 0.0
    %697 = vmatpush1.msra.mxu0 0.0
    %698 = vmatprep.subr.mxu0 0.0
    %699 = vmatpush1.msra.mxu0 0.0
    %700 = vmatprep.subr.mxu0 0.0
    %701 = vmatpush1.msra.mxu0 0.0
    %702 = vmatprep.subr.mxu0 0.0
    %703 = vmatpush1.msra.mxu0 0.0
    %704 = vmatprep.subr.mxu0 0.0
    %705 = vmatpush1.msra.mxu0 0.0
    %706 = vmatprep.subr.mxu0 0.0
    %707 = vmatpush1.msra.mxu0 0.0
    %708 = vmatprep.subr.mxu0 0.0
    %709 = vmatpush1.msra.mxu0 0.0
    %710 = vmatprep.subr.mxu0 0.0
    %711 = vmatpush1.msra.mxu0 0.0
    %712 = vmatprep.subr.mxu0 0.0
    %713 = vmatpush1.msra.mxu0 0.0
    %714 = vmatprep.subr.mxu0 0.0
    %715 = vmatpush1.msra.mxu0 0.0
    %716 = vmatprep.subr.mxu0 0.0
    %717 = vmatpush1.msra.mxu0 0.0
    %718 = vmatprep.subr.mxu0 0.0
    %719 = vmatpush1.msra.mxu0 0.0
    %720 = vmatprep.subr.mxu0 0.0
    %721 = vmatpush1.msra.mxu0 0.0
    %722 = vmatprep.subr.mxu0 0.0
    %723 = vmatpush1.msra.mxu0 0.0
    %724 = vmatprep.subr.mxu0 0.0
    %725 = vmatpush1.msra.mxu0 0.0
    %726 = vmatprep.subr.mxu0 0.0
    %727 = vmatpush1.msra.mxu0 0.0
    %728 = vmatprep.subr.mxu0 0.0
    %729 = vmatpush1.msra.mxu0 0.0
    %730 = vmatprep.subr.mxu0 0.0
    %731 = vmatpush1.msra.mxu0 0.0
    %732 = vmatprep.subr.mxu0 0.0
    %733 = vmatpush1.msra.mxu0 0.0
    %734 = vmatprep.subr.mxu0 0.0
    %735 = vmatpush1.msra.mxu0 0.0
    %736 = vmatprep.subr.mxu0 0.0
    %737 = vmatpush1.msra.mxu0 0.0
    %738 = vmatprep.subr.mxu0 0.0
    %739 = vmatpush1.msra.mxu0 0.0
    %740 = vmatprep.subr.mxu0 0.0
    %741 = vmatpush1.msra.mxu0 0.0
    %742 = vmatprep.subr.mxu0 0.0
    %743 = vmatpush1.msra.mxu0 0.0
    %744 = vmatprep.subr.mxu0 0.0
    %745 = vmatpush1.msra.mxu0 0.0
    %746 = vmatprep.subr.mxu0 0.0
    %747 = vmatpush1.msra.mxu0 0.0
    %748 = vmatprep.mubr.f32.mxu0 0.0
    %749 = vmatmul.mubr.f32.gmra.mrb[0].mxu0 %v682
    %v750 = vpop.f32.mrb[0].mxu0
    %v751 = vadd.f32 %v650, %v750
    %v752 = vpop.f32.mrb[0].mxu0
    %753 = vdwg.mxu0
    %v754 = vadd.f32 %v751, %v236
    %v755 = vxor.u32 %v754, 2147483648
    %v756 = vmul.f32 %v755, 1.442695
    %v757 = vpow.pop %v756
    %v758 = vadd.f32 %v757, 1.0
    %v759 = vrcp.pop %v758
    %v760 = vmul.f32 1.0, %v759
    %v761 = vtanh.pop %v754
    %v762 = vmul.f32 %v760, %v501
    %764 = vrot.lane.b32.xlu0 %v761, 32
    %v765 = vpop.permute.xlu0 %764
    %v767 = vmul.f32 %v760, %v765
    %769 = vrot.lane.b32.xlu0 %v767, 32
    %v770 = vpop.permute.xlu0 %769
    %v772 = vadd.f32 %v762, %v770
    %v773 = vtanh.pop %v772
    %775 = vrot.lane.b32.xlu0 %v773, 32
    %v776 = vpop.permute.xlu0 %775
    %v778 = vmul.f32 %v760, %v776
    %779 = vmatprep.subr.mxu0 0.0
    %780 = vmatpush1.msra.mxu0 %v219
    %781 = vmatprep.subr.mxu0 0.0
    %782 = vmatpush1.msra.mxu0 %v220
    %783 = vmatprep.subr.mxu0 0.0
    %784 = vmatpush1.msra.mxu0 %v221
    %785 = vmatprep.subr.mxu0 0.0
    %786 = vmatpush1.msra.mxu0 %v222
    %787 = vmatprep.subr.mxu0 0.0
    %788 = vmatpush1.msra.mxu0 0.0
    %789 = vmatprep.subr.mxu0 0.0
    %790 = vmatpush1.msra.mxu0 0.0
    %791 = vmatprep.subr.mxu0 0.0
    %792 = vmatpush1.msra.mxu0 0.0
    %793 = vmatprep.subr.mxu0 0.0
    %794 = vmatpush1.msra.mxu0 0.0
    %795 = vmatprep.subr.mxu0 0.0
    %796 = vmatpush1.msra.mxu0 0.0
    %797 = vmatprep.subr.mxu0 0.0
    %798 = vmatpush1.msra.mxu0 0.0
    %799 = vmatprep.subr.mxu0 0.0
    %800 = vmatpush1.msra.mxu0 0.0
    %801 = vmatprep.subr.mxu0 0.0
    %802 = vmatpush1.msra.mxu0 0.0
    %803 = vmatprep.subr.mxu0 0.0
    %804 = vmatpush1.msra.mxu0 0.0
    %805 = vmatprep.subr.mxu0 0.0
    %806 = vmatpush1.msra.mxu0 0.0
    %807 = vmatprep.subr.mxu0 0.0
    %808 = vmatpush1.msra.mxu0 0.0
    %809 = vmatprep.subr.mxu0 0.0
    %810 = vmatpush1.msra.mxu0 0.0
    %811 = vmatprep.subr.mxu0 0.0
    %812 = vmatpush1.msra.mxu0 0.0
    %813 = vmatprep.subr.mxu0 0.0
    %814 = vmatpush1.msra.mxu0 0.0
    %815 = vmatprep.subr.mxu0 0.0
    %816 = vmatpush1.msra.mxu0 0.0
    %817 = vmatprep.subr.mxu0 0.0
    %818 = vmatpush1.msra.mxu0 0.0
    %819 = vmatprep.subr.mxu0 0.0
    %820 = vmatpush1.msra.mxu0 0.0
    %821 = vmatprep.subr.mxu0 0.0
    %822 = vmatpush1.msra.mxu0 0.0
    %823 = vmatprep.subr.mxu0 0.0
    %824 = vmatpush1.msra.mxu0 0.0
    %825 = vmatprep.subr.mxu0 0.0
    %826 = vmatpush1.msra.mxu0 0.0
    %827 = vmatprep.subr.mxu0 0.0
    %828 = vmatpush1.msra.mxu0 0.0
    %829 = vmatprep.subr.mxu0 0.0
    %830 = vmatpush1.msra.mxu0 0.0
    %831 = vmatprep.subr.mxu0 0.0
    %832 = vmatpush1.msra.mxu0 0.0
    %833 = vmatprep.subr.mxu0 0.0
    %834 = vmatpush1.msra.mxu0 0.0
    %835 = vmatprep.subr.mxu0 0.0
    %836 = vmatpush1.msra.mxu0 0.0
    %837 = vmatprep.subr.mxu0 0.0
    %838 = vmatpush1.msra.mxu0 0.0
    %839 = vmatprep.subr.mxu0 0.0
    %840 = vmatpush1.msra.mxu0 0.0
    %841 = vmatprep.subr.mxu0 0.0
    %842 = vmatpush1.msra.mxu0 0.0
    %843 = vmatprep.mubr.f32.mxu0 0.0
    %844 = vmatmul.mubr.f32.gmra.mrb[0].mxu0 %v682
    %v845 = vpop.f32.mrb[0].mxu0
    %v846 = vadd.f32 0.0, %v845
    %v847 = vpop.f32.mrb[0].mxu0
    %848 = vdwg.mxu0
    %850 = vrot.lane.b32.xlu0 %v778, 64
    %v851 = vpop.permute.xlu0 %850
    %v852 = vsel %vm238, %v851, 0
    %854 = vmatprep.subr.mxu0 0.0
    %855 = vmatpush1.msra.mxu0 %v227
    %856 = vmatprep.subr.mxu0 0.0
    %857 = vmatpush1.msra.mxu0 %v228
    %858 = vmatprep.subr.mxu0 0.0
    %859 = vmatpush1.msra.mxu0 %v229
    %860 = vmatprep.subr.mxu0 0.0
    %861 = vmatpush1.msra.mxu0 %v230
    %862 = vmatprep.subr.mxu0 0.0
    %863 = vmatpush1.msra.mxu0 0.0
    %864 = vmatprep.subr.mxu0 0.0
    %865 = vmatpush1.msra.mxu0 0.0
    %866 = vmatprep.subr.mxu0 0.0
    %867 = vmatpush1.msra.mxu0 0.0
    %868 = vmatprep.subr.mxu0 0.0
    %869 = vmatpush1.msra.mxu0 0.0
    %870 = vmatprep.subr.mxu0 0.0
    %871 = vmatpush1.msra.mxu0 0.0
    %872 = vmatprep.subr.mxu0 0.0
    %873 = vmatpush1.msra.mxu0 0.0
    %874 = vmatprep.subr.mxu0 0.0
    %875 = vmatpush1.msra.mxu0 0.0
    %876 = vmatprep.subr.mxu0 0.0
    %877 = vmatpush1.msra.mxu0 0.0
    %878 = vmatprep.subr.mxu0 0.0
    %879 = vmatpush1.msra.mxu0 0.0
    %880 = vmatprep.subr.mxu0 0.0
    %881 = vmatpush1.msra.mxu0 0.0
    %882 = vmatprep.subr.mxu0 0.0
    %883 = vmatpush1.msra.mxu0 0.0
    %884 = vmatprep.subr.mxu0 0.0
    %885 = vmatpush1.msra.mxu0 0.0
    %886 = vmatprep.subr.mxu0 0.0
    %887 = vmatpush1.msra.mxu0 0.0
    %888 = vmatprep.subr.mxu0 0.0
    %889 = vmatpush1.msra.mxu0 0.0
    %890 = vmatprep.subr.mxu0 0.0
    %891 = vmatpush1.msra.mxu0 0.0
    %892 = vmatprep.subr.mxu0 0.0
    %893 = vmatpush1.msra.mxu0 0.0
    %894 = vmatprep.subr.mxu0 0.0
    %895 = vmatpush1.msra.mxu0 0.0
    %896 = vmatprep.subr.mxu0 0.0
    %897 = vmatpush1.msra.mxu0 0.0
    %898 = vmatprep.subr.mxu0 0.0
    %899 = vmatpush1.msra.mxu0 0.0
    %900 = vmatprep.subr.mxu0 0.0
    %901 = vmatpush1.msra.mxu0 0.0
    %902 = vmatprep.subr.mxu0 0.0
    %903 = vmatpush1.msra.mxu0 0.0
    %904 = vmatprep.subr.mxu0 0.0
    %905 = vmatpush1.msra.mxu0 0.0
    %906 = vmatprep.subr.mxu0 0.0
    %907 = vmatpush1.msra.mxu0 0.0
    %908 = vmatprep.subr.mxu0 0.0
    %909 = vmatpush1.msra.mxu0 0.0
    %910 = vmatprep.subr.mxu0 0.0
    %911 = vmatpush1.msra.mxu0 0.0
    %912 = vmatprep.subr.mxu0 0.0
    %913 = vmatpush1.msra.mxu0 0.0
    %914 = vmatprep.subr.mxu0 0.0
    %915 = vmatpush1.msra.mxu0 0.0
    %916 = vmatprep.subr.mxu0 0.0
    %917 = vmatpush1.msra.mxu0 0.0
    %918 = vmatprep.mubr.f32.mxu0 0.0
    %919 = vmatmul.mubr.f32.gmra.mrb[0].mxu0 %v852
    %v920 = vpop.f32.mrb[0].mxu0
    %v921 = vadd.f32 0.0, %v920
    %v922 = vpop.f32.mrb[0].mxu0
    %923 = vdwg.mxu0
    %v924 = vld [vmem:[#allocation2 + $0x10] sm:$0xff]
    %v925 = vadd.f32 %v924, %v846
    %v926 = vxor.u32 %v925, 2147483648
    %v927 = vmul.f32 %v926, 1.442695
    %v928 = vpow.pop %v927
    %v929 = vadd.f32 %v928, 1.0
    %v930 = vrcp.pop %v929
    %v931 = vmul.f32 1.0, %v930
    %v932 = vtanh.pop %v925
    %v933 = vmul.f32 %v931, %v672
    %935 = vrot.lane.b32.xlu0 %v932, 32
    %v936 = vpop.permute.xlu0 %935
    %v938 = vmul.f32 %v931, %v936
    %940 = vrot.lane.b32.xlu0 %v938, 32
    %v941 = vpop.permute.xlu0 %940
    %v943 = vadd.f32 %v933, %v941
    %v944 = vtanh.pop %v943
    %946 = vrot.lane.b32.xlu0 %v944, 32
    %v947 = vpop.permute.xlu0 %946
    %v949 = vmul.f32 %v931, %v947
    %951 = vrot.lane.b32.xlu0 %v949, 64
    %v952 = vpop.permute.xlu0 %951
    %v953 = vsel %vm238, %v952, 0
    %955 = vmatprep.subr.mxu0 0.0
    %956 = vmatpush1.msra.mxu0 %v223
    %957 = vmatprep.subr.mxu0 0.0
    %958 = vmatpush1.msra.mxu0 %v224
    %959 = vmatprep.subr.mxu0 0.0
    %960 = vmatpush1.msra.mxu0 %v225
    %961 = vmatprep.subr.mxu0 0.0
    %962 = vmatpush1.msra.mxu0 %v226
    %963 = vmatprep.subr.mxu0 0.0
    %964 = vmatpush1.msra.mxu0 0.0
    %965 = vmatprep.subr.mxu0 0.0
    %966 = vmatpush1.msra.mxu0 0.0
    %967 = vmatprep.subr.mxu0 0.0
    %968 = vmatpush1.msra.mxu0 0.0
    %969 = vmatprep.subr.mxu0 0.0
    %970 = vmatpush1.msra.mxu0 0.0
    %971 = vmatprep.subr.mxu0 0.0
    %972 = vmatpush1.msra.mxu0 0.0
    %973 = vmatprep.subr.mxu0 0.0
    %974 = vmatpush1.msra.mxu0 0.0
    %975 = vmatprep.subr.mxu0 0.0
    %976 = vmatpush1.msra.mxu0 0.0
    %977 = vmatprep.subr.mxu0 0.0
    %978 = vmatpush1.msra.mxu0 0.0
    %979 = vmatprep.subr.mxu0 0.0
    %980 = vmatpush1.msra.mxu0 0.0
    %981 = vmatprep.subr.mxu0 0.0
    %982 = vmatpush1.msra.mxu0 0.0
    %983 = vmatprep.subr.mxu0 0.0
    %984 = vmatpush1.msra.mxu0 0.0
    %985 = vmatprep.subr.mxu0 0.0
    %986 = vmatpush1.msra.mxu0 0.0
    %987 = vmatprep.subr.mxu0 0.0
    %988 = vmatpush1.msra.mxu0 0.0
    %989 = vmatprep.subr.mxu0 0.0
    %990 = vmatpush1.msra.mxu0 0.0
    %991 = vmatprep.subr.mxu0 0.0
    %992 = vmatpush1.msra.mxu0 0.0
    %993 = vmatprep.subr.mxu0 0.0
    %994 = vmatpush1.msra.mxu0 0.0
    %995 = vmatprep.subr.mxu0 0.0
    %996 = vmatpush1.msra.mxu0 0.0
    %997 = vmatprep.subr.mxu0 0.0
    %998 = vmatpush1.msra.mxu0 0.0
    %999 = vmatprep.subr.mxu0 0.0
    %1000 = vmatpush1.msra.mxu0 0.0
    %1001 = vmatprep.subr.mxu0 0.0
    %1002 = vmatpush1.msra.mxu0 0.0
    %1003 = vmatprep.subr.mxu0 0.0
    %1004 = vmatpush1.msra.mxu0 0.0
    %1005 = vmatprep.subr.mxu0 0.0
    %1006 = vmatpush1.msra.mxu0 0.0
    %1007 = vmatprep.subr.mxu0 0.0
    %1008 = vmatpush1.msra.mxu0 0.0
    %1009 = vmatprep.subr.mxu0 0.0
    %1010 = vmatpush1.msra.mxu0 0.0
    %1011 = vmatprep.subr.mxu0 0.0
    %1012 = vmatpush1.msra.mxu0 0.0
    %1013 = vmatprep.subr.mxu0 0.0
    %1014 = vmatpush1.msra.mxu0 0.0
    %1015 = vmatprep.subr.mxu0 0.0
    %1016 = vmatpush1.msra.mxu0 0.0
    %1017 = vmatprep.subr.mxu0 0.0
    %1018 = vmatpush1.msra.mxu0 0.0
    %1019 = vmatprep.mubr.f32.mxu0 0.0
    %1020 = vmatmul.mubr.f32.gmra.mrb[0].mxu0 %v953
    %v1021 = vpop.f32.mrb[0].mxu0
    %v1022 = vadd.f32 %v921, %v1021
    %v1023 = vpop.f32.mrb[0].mxu0
    %1024 = vdwg.mxu0
    %v1025 = vadd.f32 %v1022, %v236
    %v1026 = vxor.u32 %v1025, 2147483648
    %v1027 = vmul.f32 %v1026, 1.442695
    %v1028 = vpow.pop %v1027
    %v1029 = vadd.f32 %v1028, 1.0
    %v1030 = vrcp.pop %v1029
    %v1031 = vmul.f32 1.0, %v1030
    %v1032 = vtanh.pop %v1025
    %v1033 = vmul.f32 %v1031, %v772
    %1035 = vrot.lane.b32.xlu0 %v1032, 32
    %v1036 = vpop.permute.xlu0 %1035
    %v1038 = vmul.f32 %v1031, %v1036
    %1040 = vrot.lane.b32.xlu0 %v1038, 32
    %v1041 = vpop.permute.xlu0 %1040
    %v1043 = vadd.f32 %v1033, %v1041
    %v1044 = vtanh.pop %v1043
    %1046 = vrot.lane.b32.xlu0 %v1044, 32
    %v1047 = vpop.permute.xlu0 %1046
    %v1049 = vmul.f32 %v1031, %v1047
    %1050 = vmatprep.subr.mxu0 0.0
    %1051 = vmatpush1.msra.mxu0 %v219
    %1052 = vmatprep.subr.mxu0 0.0
    %1053 = vmatpush1.msra.mxu0 %v220
    %1054 = vmatprep.subr.mxu0 0.0
    %1055 = vmatpush1.msra.mxu0 %v221
    %1056 = vmatprep.subr.mxu0 0.0
    %1057 = vmatpush1.msra.mxu0 %v222
    %1058 = vmatprep.subr.mxu0 0.0
    %1059 = vmatpush1.msra.mxu0 0.0
    %1060 = vmatprep.subr.mxu0 0.0
    %1061 = vmatpush1.msra.mxu0 0.0
    %1062 = vmatprep.subr.mxu0 0.0
    %1063 = vmatpush1.msra.mxu0 0.0
    %1064 = vmatprep.subr.mxu0 0.0
    %1065 = vmatpush1.msra.mxu0 0.0
    %1066 = vmatprep.subr.mxu0 0.0
    %1067 = vmatpush1.msra.mxu0 0.0
    %1068 = vmatprep.subr.mxu0 0.0
    %1069 = vmatpush1.msra.mxu0 0.0
    %1070 = vmatprep.subr.mxu0 0.0
    %1071 = vmatpush1.msra.mxu0 0.0
    %1072 = vmatprep.subr.mxu0 0.0
    %1073 = vmatpush1.msra.mxu0 0.0
    %1074 = vmatprep.subr.mxu0 0.0
    %1075 = vmatpush1.msra.mxu0 0.0
    %1076 = vmatprep.subr.mxu0 0.0
    %1077 = vmatpush1.msra.mxu0 0.0
    %1078 = vmatprep.subr.mxu0 0.0
    %1079 = vmatpush1.msra.mxu0 0.0
    %1080 = vmatprep.subr.mxu0 0.0
    %1081 = vmatpush1.msra.mxu0 0.0
    %1082 = vmatprep.subr.mxu0 0.0
    %1083 = vmatpush1.msra.mxu0 0.0
    %1084 = vmatprep.subr.mxu0 0.0
    %1085 = vmatpush1.msra.mxu0 0.0
    %1086 = vmatprep.subr.mxu0 0.0
    %1087 = vmatpush1.msra.mxu0 0.0
    %1088 = vmatprep.subr.mxu0 0.0
    %1089 = vmatpush1.msra.mxu0 0.0
    %1090 = vmatprep.subr.mxu0 0.0
    %1091 = vmatpush1.msra.mxu0 0.0
    %1092 = vmatprep.subr.mxu0 0.0
    %1093 = vmatpush1.msra.mxu0 0.0
    %1094 = vmatprep.subr.mxu0 0.0
    %1095 = vmatpush1.msra.mxu0 0.0
    %1096 = vmatprep.subr.mxu0 0.0
    %1097 = vmatpush1.msra.mxu0 0.0
    %1098 = vmatprep.subr.mxu0 0.0
    %1099 = vmatpush1.msra.mxu0 0.0
    %1100 = vmatprep.subr.mxu0 0.0
    %1101 = vmatpush1.msra.mxu0 0.0
    %1102 = vmatprep.subr.mxu0 0.0
    %1103 = vmatpush1.msra.mxu0 0.0
    %1104 = vmatprep.subr.mxu0 0.0
    %1105 = vmatpush1.msra.mxu0 0.0
    %1106 = vmatprep.subr.mxu0 0.0
    %1107 = vmatpush1.msra.mxu0 0.0
    %1108 = vmatprep.subr.mxu0 0.0
    %1109 = vmatpush1.msra.mxu0 0.0
    %1110 = vmatprep.subr.mxu0 0.0
    %1111 = vmatpush1.msra.mxu0 0.0
    %1112 = vmatprep.subr.mxu0 0.0
    %1113 = vmatpush1.msra.mxu0 0.0
    %1114 = vmatprep.mubr.f32.mxu0 0.0
    %1115 = vmatmul.mubr.f32.gmra.mrb[0].mxu0 %v953
    %v1116 = vpop.f32.mrb[0].mxu0
    %v1117 = vadd.f32 0.0, %v1116
    %v1118 = vpop.f32.mrb[0].mxu0
    %1119 = vdwg.mxu0
    %1121 = vrot.lane.b32.xlu0 %v1049, 64
    %v1122 = vpop.permute.xlu0 %1121
    %v1123 = vsel %vm238, %v1122, 0
    %1125 = vmatprep.subr.mxu0 0.0
    %1126 = vmatpush1.msra.mxu0 %v227
    %1127 = vmatprep.subr.mxu0 0.0
    %1128 = vmatpush1.msra.mxu0 %v228
    %1129 = vmatprep.subr.mxu0 0.0
    %1130 = vmatpush1.msra.mxu0 %v229
    %1131 = vmatprep.subr.mxu0 0.0
    %1132 = vmatpush1.msra.mxu0 %v230
    %1133 = vmatprep.subr.mxu0 0.0
    %1134 = vmatpush1.msra.mxu0 0.0
    %1135 = vmatprep.subr.mxu0 0.0
    %1136 = vmatpush1.msra.mxu0 0.0
    %1137 = vmatprep.subr.mxu0 0.0
    %1138 = vmatpush1.msra.mxu0 0.0
    %1139 = vmatprep.subr.mxu0 0.0
    %1140 = vmatpush1.msra.mxu0 0.0
    %1141 = vmatprep.subr.mxu0 0.0
    %1142 = vmatpush1.msra.mxu0 0.0
    %1143 = vmatprep.subr.mxu0 0.0
    %1144 = vmatpush1.msra.mxu0 0.0
    %1145 = vmatprep.subr.mxu0 0.0
    %1146 = vmatpush1.msra.mxu0 0.0
    %1147 = vmatprep.subr.mxu0 0.0
    %1148 = vmatpush1.msra.mxu0 0.0
    %1149 = vmatprep.subr.mxu0 0.0
    %1150 = vmatpush1.msra.mxu0 0.0
    %1151 = vmatprep.subr.mxu0 0.0
    %1152 = vmatpush1.msra.mxu0 0.0
    %1153 = vmatprep.subr.mxu0 0.0
    %1154 = vmatpush1.msra.mxu0 0.0
    %1155 = vmatprep.subr.mxu0 0.0
    %1156 = vmatpush1.msra.mxu0 0.0
    %1157 = vmatprep.subr.mxu0 0.0
    %1158 = vmatpush1.msra.mxu0 0.0
    %1159 = vmatprep.subr.mxu0 0.0
    %1160 = vmatpush1.msra.mxu0 0.0
    %1161 = vmatprep.subr.mxu0 0.0
    %1162 = vmatpush1.msra.mxu0 0.0
    %1163 = vmatprep.subr.mxu0 0.0
    %1164 = vmatpush1.msra.mxu0 0.0
    %1165 = vmatprep.subr.mxu0 0.0
    %1166 = vmatpush1.msra.mxu0 0.0
    %1167 = vmatprep.subr.mxu0 0.0
    %1168 = vmatpush1.msra.mxu0 0.0
    %1169 = vmatprep.subr.mxu0 0.0
    %1170 = vmatpush1.msra.mxu0 0.0
    %1171 = vmatprep.subr.mxu0 0.0
    %1172 = vmatpush1.msra.mxu0 0.0
    %1173 = vmatprep.subr.mxu0 0.0
    %1174 = vmatpush1.msra.mxu0 0.0
    %1175 = vmatprep.subr.mxu0 0.0
    %1176 = vmatpush1.msra.mxu0 0.0
    %1177 = vmatprep.subr.mxu0 0.0
    %1178 = vmatpush1.msra.mxu0 0.0
    %1179 = vmatprep.subr.mxu0 0.0
    %1180 = vmatpush1.msra.mxu0 0.0
    %1181 = vmatprep.subr.mxu0 0.0
    %1182 = vmatpush1.msra.mxu0 0.0
    %1183 = vmatprep.subr.mxu0 0.0
    %1184 = vmatpush1.msra.mxu0 0.0
    %1185 = vmatprep.subr.mxu0 0.0
    %1186 = vmatpush1.msra.mxu0 0.0
    %1187 = vmatprep.subr.mxu0 0.0
    %1188 = vmatpush1.msra.mxu0 0.0
    %1189 = vmatprep.mubr.f32.mxu0 0.0
    %1190 = vmatmul.mubr.f32.gmra.mrb[0].mxu0 %v1123
    %v1191 = vpop.f32.mrb[0].mxu0
    %v1192 = vadd.f32 0.0, %v1191
    %v1193 = vpop.f32.mrb[0].mxu0
    %1194 = vdwg.mxu0
    %v1195 = vld [vmem:[#allocation2 + $0x18] sm:$0xff]
    %v1196 = vadd.f32 %v1195, %v1117
    %v1197 = vxor.u32 %v1196, 2147483648
    %v1198 = vmul.f32 %v1197, 1.442695
    %v1199 = vpow.pop %v1198
    %v1200 = vadd.f32 %v1199, 1.0
    %v1201 = vrcp.pop %v1200
    %v1202 = vmul.f32 1.0, %v1201
    %v1203 = vtanh.pop %v1196
    %v1204 = vmul.f32 %v1202, %v943
    %1206 = vrot.lane.b32.xlu0 %v1203, 32
    %v1207 = vpop.permute.xlu0 %1206
    %v1209 = vmul.f32 %v1202, %v1207
    %1211 = vrot.lane.b32.xlu0 %v1209, 32
    %v1212 = vpop.permute.xlu0 %1211
    %v1214 = vadd.f32 %v1204, %v1212
    %v1215 = vtanh.pop %v1214
    %1217 = vrot.lane.b32.xlu0 %v1215, 32
    %v1218 = vpop.permute.xlu0 %1217
    %v1220 = vmul.f32 %v1202, %v1218
    %1222 = vrot.lane.b32.xlu0 %v1220, 64
    %v1223 = vpop.permute.xlu0 %1222
    %v1224 = vsel %vm238, %v1223, 0
    %1226 = vmatprep.subr.mxu0 0.0
    %1227 = vmatpush1.msra.mxu0 %v223
    %1228 = vmatprep.subr.mxu0 0.0
    %1229 = vmatpush1.msra.mxu0 %v224
    %1230 = vmatprep.subr.mxu0 0.0
    %1231 = vmatpush1.msra.mxu0 %v225
    %1232 = vmatprep.subr.mxu0 0.0
    %1233 = vmatpush1.msra.mxu0 %v226
    %1234 = vmatprep.subr.mxu0 0.0
    %1235 = vmatpush1.msra.mxu0 0.0
    %1236 = vmatprep.subr.mxu0 0.0
    %1237 = vmatpush1.msra.mxu0 0.0
    %1238 = vmatprep.subr.mxu0 0.0
    %1239 = vmatpush1.msra.mxu0 0.0
    %1240 = vmatprep.subr.mxu0 0.0
    %1241 = vmatpush1.msra.mxu0 0.0
    %1242 = vmatprep.subr.mxu0 0.0
    %1243 = vmatpush1.msra.mxu0 0.0
    %1244 = vmatprep.subr.mxu0 0.0
    %1245 = vmatpush1.msra.mxu0 0.0
    %1246 = vmatprep.subr.mxu0 0.0
    %1247 = vmatpush1.msra.mxu0 0.0
    %1248 = vmatprep.subr.mxu0 0.0
    %1249 = vmatpush1.msra.mxu0 0.0
    %1250 = vmatprep.subr.mxu0 0.0
    %1251 = vmatpush1.msra.mxu0 0.0
    %1252 = vmatprep.subr.mxu0 0.0
    %1253 = vmatpush1.msra.mxu0 0.0
    %1254 = vmatprep.subr.mxu0 0.0
    %1255 = vmatpush1.msra.mxu0 0.0
    %1256 = vmatprep.subr.mxu0 0.0
    %1257 = vmatpush1.msra.mxu0 0.0
    %1258 = vmatprep.subr.mxu0 0.0
    %1259 = vmatpush1.msra.mxu0 0.0
    %1260 = vmatprep.subr.mxu0 0.0
    %1261 = vmatpush1.msra.mxu0 0.0
    %1262 = vmatprep.subr.mxu0 0.0
    %1263 = vmatpush1.msra.mxu0 0.0
    %1264 = vmatprep.subr.mxu0 0.0
    %1265 = vmatpush1.msra.mxu0 0.0
    %1266 = vmatprep.subr.mxu0 0.0
    %1267 = vmatpush1.msra.mxu0 0.0
    %1268 = vmatprep.subr.mxu0 0.0
    %1269 = vmatpush1.msra.mxu0 0.0
    %1270 = vmatprep.subr.mxu0 0.0
    %1271 = vmatpush1.msra.mxu0 0.0
    %1272 = vmatprep.subr.mxu0 0.0
    %1273 = vmatpush1.msra.mxu0 0.0
    %1274 = vmatprep.subr.mxu0 0.0
    %1275 = vmatpush1.msra.mxu0 0.0
    %1276 = vmatprep.subr.mxu0 0.0
    %1277 = vmatpush1.msra.mxu0 0.0
    %1278 = vmatprep.subr.mxu0 0.0
    %1279 = vmatpush1.msra.mxu0 0.0
    %1280 = vmatprep.subr.mxu0 0.0
    %1281 = vmatpush1.msra.mxu0 0.0
    %1282 = vmatprep.subr.mxu0 0.0
    %1283 = vmatpush1.msra.mxu0 0.0
    %1284 = vmatprep.subr.mxu0 0.0
    %1285 = vmatpush1.msra.mxu0 0.0
    %1286 = vmatprep.subr.mxu0 0.0
    %1287 = vmatpush1.msra.mxu0 0.0
    %1288 = vmatprep.subr.mxu0 0.0
    %1289 = vmatpush1.msra.mxu0 0.0
    %1290 = vmatprep.mubr.f32.mxu0 0.0
    %1291 = vmatmul.mubr.f32.gmra.mrb[0].mxu0 %v1224
    %v1292 = vpop.f32.mrb[0].mxu0
    %v1293 = vadd.f32 %v1192, %v1292
    %v1294 = vpop.f32.mrb[0].mxu0
    %1295 = vdwg.mxu0
    %v1296 = vadd.f32 %v1293, %v236
    %v1297 = vxor.u32 %v1296, 2147483648
    %v1298 = vmul.f32 %v1297, 1.442695
    %v1299 = vpow.pop %v1298
    %v1300 = vadd.f32 %v1299, 1.0
    %v1301 = vrcp.pop %v1300
    %v1302 = vmul.f32 1.0, %v1301
    %v1303 = vtanh.pop %v1296
    %v1304 = vmul.f32 %v1302, %v1043
    %1306 = vrot.lane.b32.xlu0 %v1303, 32
    %v1307 = vpop.permute.xlu0 %1306
    %v1309 = vmul.f32 %v1302, %v1307
    %1311 = vrot.lane.b32.xlu0 %v1309, 32
    %v1312 = vpop.permute.xlu0 %1311
    %v1314 = vadd.f32 %v1304, %v1312
    %v1315 = vtanh.pop %v1314
    %1317 = vrot.lane.b32.xlu0 %v1315, 32
    %v1318 = vpop.permute.xlu0 %1317
    %v1320 = vmul.f32 %v1302, %v1318
    %1321 = vmatprep.subr.mxu0 0.0
    %1322 = vmatpush1.msra.mxu0 %v219
    %1323 = vmatprep.subr.mxu0 0.0
    %1324 = vmatpush1.msra.mxu0 %v220
    %1325 = vmatprep.subr.mxu0 0.0
    %1326 = vmatpush1.msra.mxu0 %v221
    %1327 = vmatprep.subr.mxu0 0.0
    %1328 = vmatpush1.msra.mxu0 %v222
    %1329 = vmatprep.subr.mxu0 0.0
    %1330 = vmatpush1.msra.mxu0 0.0
    %1331 = vmatprep.subr.mxu0 0.0
    %1332 = vmatpush1.msra.mxu0 0.0
    %1333 = vmatprep.subr.mxu0 0.0
    %1334 = vmatpush1.msra.mxu0 0.0
    %1335 = vmatprep.subr.mxu0 0.0
    %1336 = vmatpush1.msra.mxu0 0.0
    %1337 = vmatprep.subr.mxu0 0.0
    %1338 = vmatpush1.msra.mxu0 0.0
    %1339 = vmatprep.subr.mxu0 0.0
    %1340 = vmatpush1.msra.mxu0 0.0
    %1341 = vmatprep.subr.mxu0 0.0
    %1342 = vmatpush1.msra.mxu0 0.0
    %1343 = vmatprep.subr.mxu0 0.0
    %1344 = vmatpush1.msra.mxu0 0.0
    %1345 = vmatprep.subr.mxu0 0.0
    %1346 = vmatpush1.msra.mxu0 0.0
    %1347 = vmatprep.subr.mxu0 0.0
    %1348 = vmatpush1.msra.mxu0 0.0
    %1349 = vmatprep.subr.mxu0 0.0
    %1350 = vmatpush1.msra.mxu0 0.0
    %1351 = vmatprep.subr.mxu0 0.0
    %1352 = vmatpush1.msra.mxu0 0.0
    %1353 = vmatprep.subr.mxu0 0.0
    %1354 = vmatpush1.msra.mxu0 0.0
    %1355 = vmatprep.subr.mxu0 0.0
    %1356 = vmatpush1.msra.mxu0 0.0
    %1357 = vmatprep.subr.mxu0 0.0
    %1358 = vmatpush1.msra.mxu0 0.0
    %1359 = vmatprep.subr.mxu0 0.0
    %1360 = vmatpush1.msra.mxu0 0.0
    %1361 = vmatprep.subr.mxu0 0.0
    %1362 = vmatpush1.msra.mxu0 0.0
    %1363 = vmatprep.subr.mxu0 0.0
    %1364 = vmatpush1.msra.mxu0 0.0
    %1365 = vmatprep.subr.mxu0 0.0
    %1366 = vmatpush1.msra.mxu0 0.0
    %1367 = vmatprep.subr.mxu0 0.0
    %1368 = vmatpush1.msra.mxu0 0.0
    %1369 = vmatprep.subr.mxu0 0.0
    %1370 = vmatpush1.msra.mxu0 0.0
    %1371 = vmatprep.subr.mxu0 0.0
    %1372 = vmatpush1.msra.mxu0 0.0
    %1373 = vmatprep.subr.mxu0 0.0
    %1374 = vmatpush1.msra.mxu0 0.0
    %1375 = vmatprep.subr.mxu0 0.0
    %1376 = vmatpush1.msra.mxu0 0.0
    %1377 = vmatprep.subr.mxu0 0.0
    %1378 = vmatpush1.msra.mxu0 0.0
    %1379 = vmatprep.subr.mxu0 0.0
    %1380 = vmatpush1.msra.mxu0 0.0
    %1381 = vmatprep.subr.mxu0 0.0
    %1382 = vmatpush1.msra.mxu0 0.0
    %1383 = vmatprep.subr.mxu0 0.0
    %1384 = vmatpush1.msra.mxu0 0.0
    %1385 = vmatprep.mubr.f32.mxu0 0.0
    %1386 = vmatmul.mubr.f32.gmra.mrb[0].mxu0 %v1224
    %v1387 = vpop.f32.mrb[0].mxu0
    %v1388 = vadd.f32 0.0, %v1387
    %v1389 = vpop.f32.mrb[0].mxu0
    %1390 = vdwg.mxu0
    %1392 = vrot.lane.b32.xlu0 %v1320, 64
    %v1393 = vpop.permute.xlu0 %1392
    %v1394 = vsel %vm238, %v1393, 0
    %1396 = vmatprep.subr.mxu0 0.0
    %1397 = vmatpush1.msra.mxu0 %v227
    %1398 = vmatprep.subr.mxu0 0.0
    %1399 = vmatpush1.msra.mxu0 %v228
    %1400 = vmatprep.subr.mxu0 0.0
    %1401 = vmatpush1.msra.mxu0 %v229
    %1402 = vmatprep.subr.mxu0 0.0
    %1403 = vmatpush1.msra.mxu0 %v230
    %1404 = vmatprep.subr.mxu0 0.0
    %1405 = vmatpush1.msra.mxu0 0.0
    %1406 = vmatprep.subr.mxu0 0.0
    %1407 = vmatpush1.msra.mxu0 0.0
    %1408 = vmatprep.subr.mxu0 0.0
    %1409 = vmatpush1.msra.mxu0 0.0
    %1410 = vmatprep.subr.mxu0 0.0
    %1411 = vmatpush1.msra.mxu0 0.0
    %1412 = vmatprep.subr.mxu0 0.0
    %1413 = vmatpush1.msra.mxu0 0.0
    %1414 = vmatprep.subr.mxu0 0.0
    %1415 = vmatpush1.msra.mxu0 0.0
    %1416 = vmatprep.subr.mxu0 0.0
    %1417 = vmatpush1.msra.mxu0 0.0
    %1418 = vmatprep.subr.mxu0 0.0
    %1419 = vmatpush1.msra.mxu0 0.0
    %1420 = vmatprep.subr.mxu0 0.0
    %1421 = vmatpush1.msra.mxu0 0.0
    %1422 = vmatprep.subr.mxu0 0.0
    %1423 = vmatpush1.msra.mxu0 0.0
    %1424 = vmatprep.subr.mxu0 0.0
    %1425 = vmatpush1.msra.mxu0 0.0
    %1426 = vmatprep.subr.mxu0 0.0
    %1427 = vmatpush1.msra.mxu0 0.0
    %1428 = vmatprep.subr.mxu0 0.0
    %1429 = vmatpush1.msra.mxu0 0.0
    %1430 = vmatprep.subr.mxu0 0.0
    %1431 = vmatpush1.msra.mxu0 0.0
    %1432 = vmatprep.subr.mxu0 0.0
    %1433 = vmatpush1.msra.mxu0 0.0
    %1434 = vmatprep.subr.mxu0 0.0
    %1435 = vmatpush1.msra.mxu0 0.0
    %1436 = vmatprep.subr.mxu0 0.0
    %1437 = vmatpush1.msra.mxu0 0.0
    %1438 = vmatprep.subr.mxu0 0.0
    %1439 = vmatpush1.msra.mxu0 0.0
    %1440 = vmatprep.subr.mxu0 0.0
    %1441 = vmatpush1.msra.mxu0 0.0
    %1442 = vmatprep.subr.mxu0 0.0
    %1443 = vmatpush1.msra.mxu0 0.0
    %1444 = vmatprep.subr.mxu0 0.0
    %1445 = vmatpush1.msra.mxu0 0.0
    %1446 = vmatprep.subr.mxu0 0.0
    %1447 = vmatpush1.msra.mxu0 0.0
    %1448 = vmatprep.subr.mxu0 0.0
    %1449 = vmatpush1.msra.mxu0 0.0
    %1450 = vmatprep.subr.mxu0 0.0
    %1451 = vmatpush1.msra.mxu0 0.0
    %1452 = vmatprep.subr.mxu0 0.0
    %1453 = vmatpush1.msra.mxu0 0.0
    %1454 = vmatprep.subr.mxu0 0.0
    %1455 = vmatpush1.msra.mxu0 0.0
    %1456 = vmatprep.subr.mxu0 0.0
    %1457 = vmatpush1.msra.mxu0 0.0
    %1458 = vmatprep.subr.mxu0 0.0
    %1459 = vmatpush1.msra.mxu0 0.0
    %1460 = vmatprep.mubr.f32.mxu0 0.0
    %1461 = vmatmul.mubr.f32.gmra.mrb[0].mxu0 %v1394
    %v1462 = vpop.f32.mrb[0].mxu0
    %v1463 = vadd.f32 0.0, %v1462
    %v1464 = vpop.f32.mrb[0].mxu0
    %1465 = vdwg.mxu0
    %v1466 = vld [vmem:[#allocation2 + $0x20] sm:$0xff]
    %v1467 = vadd.f32 %v1466, %v1388
    %v1468 = vxor.u32 %v1467, 2147483648
    %v1469 = vmul.f32 %v1468, 1.442695
    %v1470 = vpow.pop %v1469
    %v1471 = vadd.f32 %v1470, 1.0
    %v1472 = vrcp.pop %v1471
    %v1473 = vmul.f32 1.0, %v1472
    %v1474 = vtanh.pop %v1467
    %v1475 = vmul.f32 %v1473, %v1214
    %1477 = vrot.lane.b32.xlu0 %v1474, 32
    %v1478 = vpop.permute.xlu0 %1477
    %v1480 = vmul.f32 %v1473, %v1478
    %1482 = vrot.lane.b32.xlu0 %v1480, 32
    %v1483 = vpop.permute.xlu0 %1482
    %v1485 = vadd.f32 %v1475, %v1483
    %v1486 = vtanh.pop %v1485
    %1488 = vrot.lane.b32.xlu0 %v1486, 32
    %v1489 = vpop.permute.xlu0 %1488
    %v1491 = vmul.f32 %v1473, %v1489
    %1493 = vrot.lane.b32.xlu0 %v1491, 64
    %v1494 = vpop.permute.xlu0 %1493
    %v1495 = vsel %vm238, %v1494, 0
    %1497 = vmatprep.subr.mxu0 0.0
    %1498 = vmatpush1.msra.mxu0 %v223
    %1499 = vmatprep.subr.mxu0 0.0
    %1500 = vmatpush1.msra.mxu0 %v224
    %1501 = vmatprep.subr.mxu0 0.0
    %1502 = vmatpush1.msra.mxu0 %v225
    %1503 = vmatprep.subr.mxu0 0.0
    %1504 = vmatpush1.msra.mxu0 %v226
    %1505 = vmatprep.subr.mxu0 0.0
    %1506 = vmatpush1.msra.mxu0 0.0
    %1507 = vmatprep.subr.mxu0 0.0
    %1508 = vmatpush1.msra.mxu0 0.0
    %1509 = vmatprep.subr.mxu0 0.0
    %1510 = vmatpush1.msra.mxu0 0.0
    %1511 = vmatprep.subr.mxu0 0.0
    %1512 = vmatpush1.msra.mxu0 0.0
    %1513 = vmatprep.subr.mxu0 0.0
    %1514 = vmatpush1.msra.mxu0 0.0
    %1515 = vmatprep.subr.mxu0 0.0
    %1516 = vmatpush1.msra.mxu0 0.0
    %1517 = vmatprep.subr.mxu0 0.0
    %1518 = vmatpush1.msra.mxu0 0.0
    %1519 = vmatprep.subr.mxu0 0.0
    %1520 = vmatpush1.msra.mxu0 0.0
    %1521 = vmatprep.subr.mxu0 0.0
    %1522 = vmatpush1.msra.mxu0 0.0
    %1523 = vmatprep.subr.mxu0 0.0
    %1524 = vmatpush1.msra.mxu0 0.0
    %1525 = vmatprep.subr.mxu0 0.0
    %1526 = vmatpush1.msra.mxu0 0.0
    %1527 = vmatprep.subr.mxu0 0.0
    %1528 = vmatpush1.msra.mxu0 0.0
    %1529 = vmatprep.subr.mxu0 0.0
    %1530 = vmatpush1.msra.mxu0 0.0
    %1531 = vmatprep.subr.mxu0 0.0
    %1532 = vmatpush1.msra.mxu0 0.0
    %1533 = vmatprep.subr.mxu0 0.0
    %1534 = vmatpush1.msra.mxu0 0.0
    %1535 = vmatprep.subr.mxu0 0.0
    %1536 = vmatpush1.msra.mxu0 0.0
    %1537 = vmatprep.subr.mxu0 0.0
    %1538 = vmatpush1.msra.mxu0 0.0
    %1539 = vmatprep.subr.mxu0 0.0
    %1540 = vmatpush1.msra.mxu0 0.0
    %1541 = vmatprep.subr.mxu0 0.0
    %1542 = vmatpush1.msra.mxu0 0.0
    %1543 = vmatprep.subr.mxu0 0.0
    %1544 = vmatpush1.msra.mxu0 0.0
    %1545 = vmatprep.subr.mxu0 0.0
    %1546 = vmatpush1.msra.mxu0 0.0
    %1547 = vmatprep.subr.mxu0 0.0
    %1548 = vmatpush1.msra.mxu0 0.0
    %1549 = vmatprep.subr.mxu0 0.0
    %1550 = vmatpush1.msra.mxu0 0.0
    %1551 = vmatprep.subr.mxu0 0.0
    %1552 = vmatpush1.msra.mxu0 0.0
    %1553 = vmatprep.subr.mxu0 0.0
    %1554 = vmatpush1.msra.mxu0 0.0
    %1555 = vmatprep.subr.mxu0 0.0
    %1556 = vmatpush1.msra.mxu0 0.0
    %1557 = vmatprep.subr.mxu0 0.0
    %1558 = vmatpush1.msra.mxu0 0.0
    %1559 = vmatprep.subr.mxu0 0.0
    %1560 = vmatpush1.msra.mxu0 0.0
    %1561 = vmatprep.mubr.f32.mxu0 0.0
    %1562 = vmatmul.mubr.f32.gmra.mrb[0].mxu0 %v1495
    %v1563 = vpop.f32.mrb[0].mxu0
    %v1564 = vadd.f32 %v1463, %v1563
    %v1565 = vpop.f32.mrb[0].mxu0
    %1566 = vdwg.mxu0
    %v1567 = vadd.f32 %v1564, %v236
    %v1568 = vxor.u32 %v1567, 2147483648
    %v1569 = vmul.f32 %v1568, 1.442695
    %v1570 = vpow.pop %v1569
    %v1571 = vadd.f32 %v1570, 1.0
    %v1572 = vrcp.pop %v1571
    %v1573 = vmul.f32 1.0, %v1572
    %v1574 = vtanh.pop %v1567
    %v1575 = vmul.f32 %v1573, %v1314
    %1577 = vrot.lane.b32.xlu0 %v1574, 32
    %v1578 = vpop.permute.xlu0 %1577
    %v1580 = vmul.f32 %v1573, %v1578
    %1582 = vrot.lane.b32.xlu0 %v1580, 32
    %v1583 = vpop.permute.xlu0 %1582
    %v1585 = vadd.f32 %v1575, %v1583
    %v1586 = vtanh.pop %v1585
    %1588 = vrot.lane.b32.xlu0 %v1586, 32
    %v1589 = vpop.permute.xlu0 %1588
    %v1591 = vmul.f32 %v1573, %v1589
    %1592 = vmatprep.subr.mxu0 0.0
    %1593 = vmatpush1.msra.mxu0 %v219
    %1594 = vmatprep.subr.mxu0 0.0
    %1595 = vmatpush1.msra.mxu0 %v220
    %1596 = vmatprep.subr.mxu0 0.0
    %1597 = vmatpush1.msra.mxu0 %v221
    %1598 = vmatprep.subr.mxu0 0.0
    %1599 = vmatpush1.msra.mxu0 %v222
    %1600 = vmatprep.subr.mxu0 0.0
    %1601 = vmatpush1.msra.mxu0 0.0
    %1602 = vmatprep.subr.mxu0 0.0
    %1603 = vmatpush1.msra.mxu0 0.0
    %1604 = vmatprep.subr.mxu0 0.0
    %1605 = vmatpush1.msra.mxu0 0.0
    %1606 = vmatprep.subr.mxu0 0.0
    %1607 = vmatpush1.msra.mxu0 0.0
    %1608 = vmatprep.subr.mxu0 0.0
    %1609 = vmatpush1.msra.mxu0 0.0
    %1610 = vmatprep.subr.mxu0 0.0
    %1611 = vmatpush1.msra.mxu0 0.0
    %1612 = vmatprep.subr.mxu0 0.0
    %1613 = vmatpush1.msra.mxu0 0.0
    %1614 = vmatprep.subr.mxu0 0.0
    %1615 = vmatpush1.msra.mxu0 0.0
    %1616 = vmatprep.subr.mxu0 0.0
    %1617 = vmatpush1.msra.mxu0 0.0
    %1618 = vmatprep.subr.mxu0 0.0
    %1619 = vmatpush1.msra.mxu0 0.0
    %1620 = vmatprep.subr.mxu0 0.0
    %1621 = vmatpush1.msra.mxu0 0.0
    %1622 = vmatprep.subr.mxu0 0.0
    %1623 = vmatpush1.msra.mxu0 0.0
    %1624 = vmatprep.subr.mxu0 0.0
    %1625 = vmatpush1.msra.mxu0 0.0
    %1626 = vmatprep.subr.mxu0 0.0
    %1627 = vmatpush1.msra.mxu0 0.0
    %1628 = vmatprep.subr.mxu0 0.0
    %1629 = vmatpush1.msra.mxu0 0.0
    %1630 = vmatprep.subr.mxu0 0.0
    %1631 = vmatpush1.msra.mxu0 0.0
    %1632 = vmatprep.subr.mxu0 0.0
    %1633 = vmatpush1.msra.mxu0 0.0
    %1634 = vmatprep.subr.mxu0 0.0
    %1635 = vmatpush1.msra.mxu0 0.0
    %1636 = vmatprep.subr.mxu0 0.0
    %1637 = vmatpush1.msra.mxu0 0.0
    %1638 = vmatprep.subr.mxu0 0.0
    %1639 = vmatpush1.msra.mxu0 0.0
    %1640 = vmatprep.subr.mxu0 0.0
    %1641 = vmatpush1.msra.mxu0 0.0
    %1642 = vmatprep.subr.mxu0 0.0
    %1643 = vmatpush1.msra.mxu0 0.0
    %1644 = vmatprep.subr.mxu0 0.0
    %1645 = vmatpush1.msra.mxu0 0.0
    %1646 = vmatprep.subr.mxu0 0.0
    %1647 = vmatpush1.msra.mxu0 0.0
    %1648 = vmatprep.subr.mxu0 0.0
    %1649 = vmatpush1.msra.mxu0 0.0
    %1650 = vmatprep.subr.mxu0 0.0
    %1651 = vmatpush1.msra.mxu0 0.0
    %1652 = vmatprep.subr.mxu0 0.0
    %1653 = vmatpush1.msra.mxu0 0.0
    %1654 = vmatprep.subr.mxu0 0.0
    %1655 = vmatpush1.msra.mxu0 0.0
    %1656 = vmatprep.mubr.f32.mxu0 0.0
    %1657 = vmatmul.mubr.f32.gmra.mrb[0].mxu0 %v1495
    %v1658 = vpop.f32.mrb[0].mxu0
    %v1659 = vadd.f32 0.0, %v1658
    %v1660 = vpop.f32.mrb[0].mxu0
    %1661 = vdwg.mxu0
    %1663 = vrot.lane.b32.xlu0 %v1591, 64
    %v1664 = vpop.permute.xlu0 %1663
    %v1665 = vsel %vm238, %v1664, 0
    %1667 = vmatprep.subr.mxu0 0.0
    %1668 = vmatpush1.msra.mxu0 %v227
    %1669 = vmatprep.subr.mxu0 0.0
    %1670 = vmatpush1.msra.mxu0 %v228
    %1671 = vmatprep.subr.mxu0 0.0
    %1672 = vmatpush1.msra.mxu0 %v229
    %1673 = vmatprep.subr.mxu0 0.0
    %1674 = vmatpush1.msra.mxu0 %v230
    %1675 = vmatprep.subr.mxu0 0.0
    %1676 = vmatpush1.msra.mxu0 0.0
    %1677 = vmatprep.subr.mxu0 0.0
    %1678 = vmatpush1.msra.mxu0 0.0
    %1679 = vmatprep.subr.mxu0 0.0
    %1680 = vmatpush1.msra.mxu0 0.0
    %1681 = vmatprep.subr.mxu0 0.0
    %1682 = vmatpush1.msra.mxu0 0.0
    %1683 = vmatprep.subr.mxu0 0.0
    %1684 = vmatpush1.msra.mxu0 0.0
    %1685 = vmatprep.subr.mxu0 0.0
    %1686 = vmatpush1.msra.mxu0 0.0
    %1687 = vmatprep.subr.mxu0 0.0
    %1688 = vmatpush1.msra.mxu0 0.0
    %1689 = vmatprep.subr.mxu0 0.0
    %1690 = vmatpush1.msra.mxu0 0.0
    %1691 = vmatprep.subr.mxu0 0.0
    %1692 = vmatpush1.msra.mxu0 0.0
    %1693 = vmatprep.subr.mxu0 0.0
    %1694 = vmatpush1.msra.mxu0 0.0
    %1695 = vmatprep.subr.mxu0 0.0
    %1696 = vmatpush1.msra.mxu0 0.0
    %1697 = vmatprep.subr.mxu0 0.0
    %1698 = vmatpush1.msra.mxu0 0.0
    %1699 = vmatprep.subr.mxu0 0.0
    %1700 = vmatpush1.msra.mxu0 0.0
    %1701 = vmatprep.subr.mxu0 0.0
    %1702 = vmatpush1.msra.mxu0 0.0
    %1703 = vmatprep.subr.mxu0 0.0
    %1704 = vmatpush1.msra.mxu0 0.0
    %1705 = vmatprep.subr.mxu0 0.0
    %1706 = vmatpush1.msra.mxu0 0.0
    %1707 = vmatprep.subr.mxu0 0.0
    %1708 = vmatpush1.msra.mxu0 0.0
    %1709 = vmatprep.subr.mxu0 0.0
    %1710 = vmatpush1.msra.mxu0 0.0
    %1711 = vmatprep.subr.mxu0 0.0
    %1712 = vmatpush1.msra.mxu0 0.0
    %1713 = vmatprep.subr.mxu0 0.0
    %1714 = vmatpush1.msra.mxu0 0.0
    %1715 = vmatprep.subr.mxu0 0.0
    %1716 = vmatpush1.msra.mxu0 0.0
    %1717 = vmatprep.subr.mxu0 0.0
    %1718 = vmatpush1.msra.mxu0 0.0
    %1719 = vmatprep.subr.mxu0 0.0
    %1720 = vmatpush1.msra.mxu0 0.0
    %1721 = vmatprep.subr.mxu0 0.0
    %1722 = vmatpush1.msra.mxu0 0.0
    %1723 = vmatprep.subr.mxu0 0.0
    %1724 = vmatpush1.msra.mxu0 0.0
    %1725 = vmatprep.subr.mxu0 0.0
    %1726 = vmatpush1.msra.mxu0 0.0
    %1727 = vmatprep.subr.mxu0 0.0
    %1728 = vmatpush1.msra.mxu0 0.0
    %1729 = vmatprep.subr.mxu0 0.0
    %1730 = vmatpush1.msra.mxu0 0.0
    %1731 = vmatprep.mubr.f32.mxu0 0.0
    %1732 = vmatmul.mubr.f32.gmra.mrb[0].mxu0 %v1665
    %v1733 = vpop.f32.mrb[0].mxu0
    %v1734 = vadd.f32 0.0, %v1733
    %v1735 = vpop.f32.mrb[0].mxu0
    %1736 = vdwg.mxu0
    %v1737 = vld [vmem:[#allocation2 + $0x28] sm:$0xff]
    %v1738 = vadd.f32 %v1737, %v1659
    %v1739 = vxor.u32 %v1738, 2147483648
    %v1740 = vmul.f32 %v1739, 1.442695
    %v1741 = vpow.pop %v1740
    %v1742 = vadd.f32 %v1741, 1.0
    %v1743 = vrcp.pop %v1742
    %v1744 = vmul.f32 1.0, %v1743
    %v1745 = vtanh.pop %v1738
    %v1746 = vmul.f32 %v1744, %v1485
    %1748 = vrot.lane.b32.xlu0 %v1745, 32
    %v1749 = vpop.permute.xlu0 %1748
    %v1751 = vmul.f32 %v1744, %v1749
    %1753 = vrot.lane.b32.xlu0 %v1751, 32
    %v1754 = vpop.permute.xlu0 %1753
    %v1756 = vadd.f32 %v1746, %v1754
    %v1757 = vtanh.pop %v1756
    %1759 = vrot.lane.b32.xlu0 %v1757, 32
    %v1760 = vpop.permute.xlu0 %1759
    %v1762 = vmul.f32 %v1744, %v1760
    %1764 = vrot.lane.b32.xlu0 %v1762, 64
    %v1765 = vpop.permute.xlu0 %1764
    %v1766 = vsel %vm238, %v1765, 0
    %1768 = vmatprep.subr.mxu0 0.0
    %1769 = vmatpush1.msra.mxu0 %v223
    %1770 = vmatprep.subr.mxu0 0.0
    %1771 = vmatpush1.msra.mxu0 %v224
    %1772 = vmatprep.subr.mxu0 0.0
    %1773 = vmatpush1.msra.mxu0 %v225
    %1774 = vmatprep.subr.mxu0 0.0
    %1775 = vmatpush1.msra.mxu0 %v226
    %1776 = vmatprep.subr.mxu0 0.0
    %1777 = vmatpush1.msra.mxu0 0.0
    %1778 = vmatprep.subr.mxu0 0.0
    %1779 = vmatpush1.msra.mxu0 0.0
    %1780 = vmatprep.subr.mxu0 0.0
    %1781 = vmatpush1.msra.mxu0 0.0
    %1782 = vmatprep.subr.mxu0 0.0
    %1783 = vmatpush1.msra.mxu0 0.0
    %1784 = vmatprep.subr.mxu0 0.0
    %1785 = vmatpush1.msra.mxu0 0.0
    %1786 = vmatprep.subr.mxu0 0.0
    %1787 = vmatpush1.msra.mxu0 0.0
    %1788 = vmatprep.subr.mxu0 0.0
    %1789 = vmatpush1.msra.mxu0 0.0
    %1790 = vmatprep.subr.mxu0 0.0
    %1791 = vmatpush1.msra.mxu0 0.0
    %1792 = vmatprep.subr.mxu0 0.0
    %1793 = vmatpush1.msra.mxu0 0.0
    %1794 = vmatprep.subr.mxu0 0.0
    %1795 = vmatpush1.msra.mxu0 0.0
    %1796 = vmatprep.subr.mxu0 0.0
    %1797 = vmatpush1.msra.mxu0 0.0
    %1798 = vmatprep.subr.mxu0 0.0
    %1799 = vmatpush1.msra.mxu0 0.0
    %1800 = vmatprep.subr.mxu0 0.0
    %1801 = vmatpush1.msra.mxu0 0.0
    %1802 = vmatprep.subr.mxu0 0.0
    %1803 = vmatpush1.msra.mxu0 0.0
    %1804 = vmatprep.subr.mxu0 0.0
    %1805 = vmatpush1.msra.mxu0 0.0
    %1806 = vmatprep.subr.mxu0 0.0
    %1807 = vmatpush1.msra.mxu0 0.0
    %1808 = vmatprep.subr.mxu0 0.0
    %1809 = vmatpush1.msra.mxu0 0.0
    %1810 = vmatprep.subr.mxu0 0.0
    %1811 = vmatpush1.msra.mxu0 0.0
    %1812 = vmatprep.subr.mxu0 0.0
    %1813 = vmatpush1.msra.mxu0 0.0
    %1814 = vmatprep.subr.mxu0 0.0
    %1815 = vmatpush1.msra.mxu0 0.0
    %1816 = vmatprep.subr.mxu0 0.0
    %1817 = vmatpush1.msra.mxu0 0.0
    %1818 = vmatprep.subr.mxu0 0.0
    %1819 = vmatpush1.msra.mxu0 0.0
    %1820 = vmatprep.subr.mxu0 0.0
    %1821 = vmatpush1.msra.mxu0 0.0
    %1822 = vmatprep.subr.mxu0 0.0
    %1823 = vmatpush1.msra.mxu0 0.0
    %1824 = vmatprep.subr.mxu0 0.0
    %1825 = vmatpush1.msra.mxu0 0.0
    %1826 = vmatprep.subr.mxu0 0.0
    %1827 = vmatpush1.msra.mxu0 0.0
    %1828 = vmatprep.subr.mxu0 0.0
    %1829 = vmatpush1.msra.mxu0 0.0
    %1830 = vmatprep.subr.mxu0 0.0
    %1831 = vmatpush1.msra.mxu0 0.0
    %1832 = vmatprep.mubr.f32.mxu0 0.0
    %1833 = vmatmul.mubr.f32.gmra.mrb[0].mxu0 %v1766
    %v1834 = vpop.f32.mrb[0].mxu0
    %v1835 = vadd.f32 %v1734, %v1834
    %v1836 = vpop.f32.mrb[0].mxu0
    %1837 = vdwg.mxu0
    %v1838 = vadd.f32 %v1835, %v236
    %v1839 = vxor.u32 %v1838, 2147483648
    %v1840 = vmul.f32 %v1839, 1.442695
    %v1841 = vpow.pop %v1840
    %v1842 = vadd.f32 %v1841, 1.0
    %v1843 = vrcp.pop %v1842
    %v1844 = vmul.f32 1.0, %v1843
    %v1845 = vtanh.pop %v1838
    %v1846 = vmul.f32 %v1844, %v1585
    %1848 = vrot.lane.b32.xlu0 %v1845, 32
    %v1849 = vpop.permute.xlu0 %1848
    %v1851 = vmul.f32 %v1844, %v1849
    %1853 = vrot.lane.b32.xlu0 %v1851, 32
    %v1854 = vpop.permute.xlu0 %1853
    %v1856 = vadd.f32 %v1846, %v1854
    %v1857 = vtanh.pop %v1856
    %1859 = vrot.lane.b32.xlu0 %v1857, 32
    %v1860 = vpop.permute.xlu0 %1859
    %v1862 = vmul.f32 %v1844, %v1860
    %1863 = vmatprep.subr.mxu0 0.0
    %1864 = vmatpush1.msra.mxu0 %v219
    %1865 = vmatprep.subr.mxu0 0.0
    %1866 = vmatpush1.msra.mxu0 %v220
    %1867 = vmatprep.subr.mxu0 0.0
    %1868 = vmatpush1.msra.mxu0 %v221
    %1869 = vmatprep.subr.mxu0 0.0
    %1870 = vmatpush1.msra.mxu0 %v222
    %1871 = vmatprep.subr.mxu0 0.0
    %1872 = vmatpush1.msra.mxu0 0.0
    %1873 = vmatprep.subr.mxu0 0.0
    %1874 = vmatpush1.msra.mxu0 0.0
    %1875 = vmatprep.subr.mxu0 0.0
    %1876 = vmatpush1.msra.mxu0 0.0
    %1877 = vmatprep.subr.mxu0 0.0
    %1878 = vmatpush1.msra.mxu0 0.0
    %1879 = vmatprep.subr.mxu0 0.0
    %1880 = vmatpush1.msra.mxu0 0.0
    %1881 = vmatprep.subr.mxu0 0.0
    %1882 = vmatpush1.msra.mxu0 0.0
    %1883 = vmatprep.subr.mxu0 0.0
    %1884 = vmatpush1.msra.mxu0 0.0
    %1885 = vmatprep.subr.mxu0 0.0
    %1886 = vmatpush1.msra.mxu0 0.0
    %1887 = vmatprep.subr.mxu0 0.0
    %1888 = vmatpush1.msra.mxu0 0.0
    %1889 = vmatprep.subr.mxu0 0.0
    %1890 = vmatpush1.msra.mxu0 0.0
    %1891 = vmatprep.subr.mxu0 0.0
    %1892 = vmatpush1.msra.mxu0 0.0
    %1893 = vmatprep.subr.mxu0 0.0
    %1894 = vmatpush1.msra.mxu0 0.0
    %1895 = vmatprep.subr.mxu0 0.0
    %1896 = vmatpush1.msra.mxu0 0.0
    %1897 = vmatprep.subr.mxu0 0.0
    %1898 = vmatpush1.msra.mxu0 0.0
    %1899 = vmatprep.subr.mxu0 0.0
    %1900 = vmatpush1.msra.mxu0 0.0
    %1901 = vmatprep.subr.mxu0 0.0
    %1902 = vmatpush1.msra.mxu0 0.0
    %1903 = vmatprep.subr.mxu0 0.0
    %1904 = vmatpush1.msra.mxu0 0.0
    %1905 = vmatprep.subr.mxu0 0.0
    %1906 = vmatpush1.msra.mxu0 0.0
    %1907 = vmatprep.subr.mxu0 0.0
    %1908 = vmatpush1.msra.mxu0 0.0
    %1909 = vmatprep.subr.mxu0 0.0
    %1910 = vmatpush1.msra.mxu0 0.0
    %1911 = vmatprep.subr.mxu0 0.0
    %1912 = vmatpush1.msra.mxu0 0.0
    %1913 = vmatprep.subr.mxu0 0.0
    %1914 = vmatpush1.msra.mxu0 0.0
    %1915 = vmatprep.subr.mxu0 0.0
    %1916 = vmatpush1.msra.mxu0 0.0
    %1917 = vmatprep.subr.mxu0 0.0
    %1918 = vmatpush1.msra.mxu0 0.0
    %1919 = vmatprep.subr.mxu0 0.0
    %1920 = vmatpush1.msra.mxu0 0.0
    %1921 = vmatprep.subr.mxu0 0.0
    %1922 = vmatpush1.msra.mxu0 0.0
    %1923 = vmatprep.subr.mxu0 0.0
    %1924 = vmatpush1.msra.mxu0 0.0
    %1925 = vmatprep.subr.mxu0 0.0
    %1926 = vmatpush1.msra.mxu0 0.0
    %1927 = vmatprep.mubr.f32.mxu0 0.0
    %1928 = vmatmul.mubr.f32.gmra.mrb[0].mxu0 %v1766
    %v1929 = vpop.f32.mrb[0].mxu0
    %v1930 = vadd.f32 0.0, %v1929
    %v1931 = vpop.f32.mrb[0].mxu0
    %1932 = vdwg.mxu0
    %1934 = vrot.lane.b32.xlu0 %v1862, 64
    %v1935 = vpop.permute.xlu0 %1934
    %v1936 = vsel %vm238, %v1935, 0
    %1938 = vmatprep.subr.mxu0 0.0
    %1939 = vmatpush1.msra.mxu0 %v227
    %1940 = vmatprep.subr.mxu0 0.0
    %1941 = vmatpush1.msra.mxu0 %v228
    %1942 = vmatprep.subr.mxu0 0.0
    %1943 = vmatpush1.msra.mxu0 %v229
    %1944 = vmatprep.subr.mxu0 0.0
    %1945 = vmatpush1.msra.mxu0 %v230
    %1946 = vmatprep.subr.mxu0 0.0
    %1947 = vmatpush1.msra.mxu0 0.0
    %1948 = vmatprep.subr.mxu0 0.0
    %1949 = vmatpush1.msra.mxu0 0.0
    %1950 = vmatprep.subr.mxu0 0.0
    %1951 = vmatpush1.msra.mxu0 0.0
    %1952 = vmatprep.subr.mxu0 0.0
    %1953 = vmatpush1.msra.mxu0 0.0
    %1954 = vmatprep.subr.mxu0 0.0
    %1955 = vmatpush1.msra.mxu0 0.0
    %1956 = vmatprep.subr.mxu0 0.0
    %1957 = vmatpush1.msra.mxu0 0.0
    %1958 = vmatprep.subr.mxu0 0.0
    %1959 = vmatpush1.msra.mxu0 0.0
    %1960 = vmatprep.subr.mxu0 0.0
    %1961 = vmatpush1.msra.mxu0 0.0
    %1962 = vmatprep.subr.mxu0 0.0
    %1963 = vmatpush1.msra.mxu0 0.0
    %1964 = vmatprep.subr.mxu0 0.0
    %1965 = vmatpush1.msra.mxu0 0.0
    %1966 = vmatprep.subr.mxu0 0.0
    %1967 = vmatpush1.msra.mxu0 0.0
    %1968 = vmatprep.subr.mxu0 0.0
    %1969 = vmatpush1.msra.mxu0 0.0
    %1970 = vmatprep.subr.mxu0 0.0
    %1971 = vmatpush1.msra.mxu0 0.0
    %1972 = vmatprep.subr.mxu0 0.0
    %1973 = vmatpush1.msra.mxu0 0.0
    %1974 = vmatprep.subr.mxu0 0.0
    %1975 = vmatpush1.msra.mxu0 0.0
    %1976 = vmatprep.subr.mxu0 0.0
    %1977 = vmatpush1.msra.mxu0 0.0
    %1978 = vmatprep.subr.mxu0 0.0
    %1979 = vmatpush1.msra.mxu0 0.0
    %1980 = vmatprep.subr.mxu0 0.0
    %1981 = vmatpush1.msra.mxu0 0.0
    %1982 = vmatprep.subr.mxu0 0.0
    %1983 = vmatpush1.msra.mxu0 0.0
    %1984 = vmatprep.subr.mxu0 0.0
    %1985 = vmatpush1.msra.mxu0 0.0
    %1986 = vmatprep.subr.mxu0 0.0
    %1987 = vmatpush1.msra.mxu0 0.0
    %1988 = vmatprep.subr.mxu0 0.0
    %1989 = vmatpush1.msra.mxu0 0.0
    %1990 = vmatprep.subr.mxu0 0.0
    %1991 = vmatpush1.msra.mxu0 0.0
    %1992 = vmatprep.subr.mxu0 0.0
    %1993 = vmatpush1.msra.mxu0 0.0
    %1994 = vmatprep.subr.mxu0 0.0
    %1995 = vmatpush1.msra.mxu0 0.0
    %1996 = vmatprep.subr.mxu0 0.0
    %1997 = vmatpush1.msra.mxu0 0.0
    %1998 = vmatprep.subr.mxu0 0.0
    %1999 = vmatpush1.msra.mxu0 0.0
    %2000 = vmatprep.subr.mxu0 0.0
    %2001 = vmatpush1.msra.mxu0 0.0
    %2002 = vmatprep.mubr.f32.mxu0 0.0
    %2003 = vmatmul.mubr.f32.gmra.mrb[0].mxu0 %v1936
    %v2004 = vpop.f32.mrb[0].mxu0
    %v2005 = vadd.f32 0.0, %v2004
    %v2006 = vpop.f32.mrb[0].mxu0
    %2007 = vdwg.mxu0
    %v2008 = vld [vmem:[#allocation2 + $0x30] sm:$0xff]
    %v2009 = vadd.f32 %v2008, %v1930
    %v2010 = vxor.u32 %v2009, 2147483648
    %v2011 = vmul.f32 %v2010, 1.442695
    %v2012 = vpow.pop %v2011
    %v2013 = vadd.f32 %v2012, 1.0
    %v2014 = vrcp.pop %v2013
    %v2015 = vmul.f32 1.0, %v2014
    %v2016 = vtanh.pop %v2009
    %v2017 = vmul.f32 %v2015, %v1756
    %2019 = vrot.lane.b32.xlu0 %v2016, 32
    %v2020 = vpop.permute.xlu0 %2019
    %v2022 = vmul.f32 %v2015, %v2020
    %2024 = vrot.lane.b32.xlu0 %v2022, 32
    %v2025 = vpop.permute.xlu0 %2024
    %v2027 = vadd.f32 %v2017, %v2025
    %v2028 = vtanh.pop %v2027
    %2030 = vrot.lane.b32.xlu0 %v2028, 32
    %v2031 = vpop.permute.xlu0 %2030
    %v2033 = vmul.f32 %v2015, %v2031
    %2035 = vrot.lane.b32.xlu0 %v2033, 64
    %v2036 = vpop.permute.xlu0 %2035
    %v2037 = vsel %vm238, %v2036, 0
    %2039 = vmatprep.subr.mxu0 0.0
    %2040 = vmatpush1.msra.mxu0 %v223
    %2041 = vmatprep.subr.mxu0 0.0
    %2042 = vmatpush1.msra.mxu0 %v224
    %2043 = vmatprep.subr.mxu0 0.0
    %2044 = vmatpush1.msra.mxu0 %v225
    %2045 = vmatprep.subr.mxu0 0.0
    %2046 = vmatpush1.msra.mxu0 %v226
    %2047 = vmatprep.subr.mxu0 0.0
    %2048 = vmatpush1.msra.mxu0 0.0
    %2049 = vmatprep.subr.mxu0 0.0
    %2050 = vmatpush1.msra.mxu0 0.0
    %2051 = vmatprep.subr.mxu0 0.0
    %2052 = vmatpush1.msra.mxu0 0.0
    %2053 = vmatprep.subr.mxu0 0.0
    %2054 = vmatpush1.msra.mxu0 0.0
    %2055 = vmatprep.subr.mxu0 0.0
    %2056 = vmatpush1.msra.mxu0 0.0
    %2057 = vmatprep.subr.mxu0 0.0
    %2058 = vmatpush1.msra.mxu0 0.0
    %2059 = vmatprep.subr.mxu0 0.0
    %2060 = vmatpush1.msra.mxu0 0.0
    %2061 = vmatprep.subr.mxu0 0.0
    %2062 = vmatpush1.msra.mxu0 0.0
    %2063 = vmatprep.subr.mxu0 0.0
    %2064 = vmatpush1.msra.mxu0 0.0
    %2065 = vmatprep.subr.mxu0 0.0
    %2066 = vmatpush1.msra.mxu0 0.0
    %2067 = vmatprep.subr.mxu0 0.0
    %2068 = vmatpush1.msra.mxu0 0.0
    %2069 = vmatprep.subr.mxu0 0.0
    %2070 = vmatpush1.msra.mxu0 0.0
    %2071 = vmatprep.subr.mxu0 0.0
    %2072 = vmatpush1.msra.mxu0 0.0
    %2073 = vmatprep.subr.mxu0 0.0
    %2074 = vmatpush1.msra.mxu0 0.0
    %2075 = vmatprep.subr.mxu0 0.0
    %2076 = vmatpush1.msra.mxu0 0.0
    %2077 = vmatprep.subr.mxu0 0.0
    %2078 = vmatpush1.msra.mxu0 0.0
    %2079 = vmatprep.subr.mxu0 0.0
    %2080 = vmatpush1.msra.mxu0 0.0
    %2081 = vmatprep.subr.mxu0 0.0
    %2082 = vmatpush1.msra.mxu0 0.0
    %2083 = vmatprep.subr.mxu0 0.0
    %2084 = vmatpush1.msra.mxu0 0.0
    %2085 = vmatprep.subr.mxu0 0.0
    %2086 = vmatpush1.msra.mxu0 0.0
    %2087 = vmatprep.subr.mxu0 0.0
    %2088 = vmatpush1.msra.mxu0 0.0
    %2089 = vmatprep.subr.mxu0 0.0
    %2090 = vmatpush1.msra.mxu0 0.0
    %2091 = vmatprep.subr.mxu0 0.0
    %2092 = vmatpush1.msra.mxu0 0.0
    %2093 = vmatprep.subr.mxu0 0.0
    %2094 = vmatpush1.msra.mxu0 0.0
    %2095 = vmatprep.subr.mxu0 0.0
    %2096 = vmatpush1.msra.mxu0 0.0
    %2097 = vmatprep.subr.mxu0 0.0
    %2098 = vmatpush1.msra.mxu0 0.0
    %2099 = vmatprep.subr.mxu0 0.0
    %2100 = vmatpush1.msra.mxu0 0.0
    %2101 = vmatprep.subr.mxu0 0.0
    %2102 = vmatpush1.msra.mxu0 0.0
    %2103 = vmatprep.mubr.f32.mxu0 0.0
    %2104 = vmatmul.mubr.f32.gmra.mrb[0].mxu0 %v2037
    %v2105 = vpop.f32.mrb[0].mxu0
    %v2106 = vadd.f32 %v2005, %v2105
    %v2107 = vpop.f32.mrb[0].mxu0
    %2108 = vdwg.mxu0
    %v2109 = vadd.f32 %v2106, %v236
    %v2110 = vxor.u32 %v2109, 2147483648
    %v2111 = vmul.f32 %v2110, 1.442695
    %v2112 = vpow.pop %v2111
    %v2113 = vadd.f32 %v2112, 1.0
    %v2114 = vrcp.pop %v2113
    %v2115 = vmul.f32 1.0, %v2114
    %v2116 = vtanh.pop %v2109
    %v2117 = vmul.f32 %v2115, %v1856
    %2119 = vrot.lane.b32.xlu0 %v2116, 32
    %v2120 = vpop.permute.xlu0 %2119
    %v2122 = vmul.f32 %v2115, %v2120
    %2124 = vrot.lane.b32.xlu0 %v2122, 32
    %v2125 = vpop.permute.xlu0 %2124
    %v2127 = vadd.f32 %v2117, %v2125
    %v2128 = vtanh.pop %v2127
    %2130 = vrot.lane.b32.xlu0 %v2128, 32
    %v2131 = vpop.permute.xlu0 %2130
    %v2133 = vmul.f32 %v2115, %v2131
    %2134 = vmatprep.subr.mxu0 0.0
    %2135 = vmatpush1.msra.mxu0 %v219
    %2136 = vmatprep.subr.mxu0 0.0
    %2137 = vmatpush1.msra.mxu0 %v220
    %2138 = vmatprep.subr.mxu0 0.0
    %2139 = vmatpush1.msra.mxu0 %v221
    %2140 = vmatprep.subr.mxu0 0.0
    %2141 = vmatpush1.msra.mxu0 %v222
    %2142 = vmatprep.subr.mxu0 0.0
    %2143 = vmatpush1.msra.mxu0 0.0
    %2144 = vmatprep.subr.mxu0 0.0
    %2145 = vmatpush1.msra.mxu0 0.0
    %2146 = vmatprep.subr.mxu0 0.0
    %2147 = vmatpush1.msra.mxu0 0.0
    %2148 = vmatprep.subr.mxu0 0.0
    %2149 = vmatpush1.msra.mxu0 0.0
    %2150 = vmatprep.subr.mxu0 0.0
    %2151 = vmatpush1.msra.mxu0 0.0
    %2152 = vmatprep.subr.mxu0 0.0
    %2153 = vmatpush1.msra.mxu0 0.0
    %2154 = vmatprep.subr.mxu0 0.0
    %2155 = vmatpush1.msra.mxu0 0.0
    %2156 = vmatprep.subr.mxu0 0.0
    %2157 = vmatpush1.msra.mxu0 0.0
    %2158 = vmatprep.subr.mxu0 0.0
    %2159 = vmatpush1.msra.mxu0 0.0
    %2160 = vmatprep.subr.mxu0 0.0
    %2161 = vmatpush1.msra.mxu0 0.0
    %2162 = vmatprep.subr.mxu0 0.0
    %2163 = vmatpush1.msra.mxu0 0.0
    %2164 = vmatprep.subr.mxu0 0.0
    %2165 = vmatpush1.msra.mxu0 0.0
    %2166 = vmatprep.subr.mxu0 0.0
    %2167 = vmatpush1.msra.mxu0 0.0
    %2168 = vmatprep.subr.mxu0 0.0
    %2169 = vmatpush1.msra.mxu0 0.0
    %2170 = vmatprep.subr.mxu0 0.0
    %2171 = vmatpush1.msra.mxu0 0.0
    %2172 = vmatprep.subr.mxu0 0.0
    %2173 = vmatpush1.msra.mxu0 0.0
    %2174 = vmatprep.subr.mxu0 0.0
    %2175 = vmatpush1.msra.mxu0 0.0
    %2176 = vmatprep.subr.mxu0 0.0
    %2177 = vmatpush1.msra.mxu0 0.0
    %2178 = vmatprep.subr.mxu0 0.0
    %2179 = vmatpush1.msra.mxu0 0.0
    %2180 = vmatprep.subr.mxu0 0.0
    %2181 = vmatpush1.msra.mxu0 0.0
    %2182 = vmatprep.subr.mxu0 0.0
    %2183 = vmatpush1.msra.mxu0 0.0
    %2184 = vmatprep.subr.mxu0 0.0
    %2185 = vmatpush1.msra.mxu0 0.0
    %2186 = vmatprep.subr.mxu0 0.0
    %2187 = vmatpush1.msra.mxu0 0.0
    %2188 = vmatprep.subr.mxu0 0.0
    %2189 = vmatpush1.msra.mxu0 0.0
    %2190 = vmatprep.subr.mxu0 0.0
    %2191 = vmatpush1.msra.mxu0 0.0
    %2192 = vmatprep.subr.mxu0 0.0
    %2193 = vmatpush1.msra.mxu0 0.0
    %2194 = vmatprep.subr.mxu0 0.0
    %2195 = vmatpush1.msra.mxu0 0.0
    %2196 = vmatprep.subr.mxu0 0.0
    %2197 = vmatpush1.msra.mxu0 0.0
    %2198 = vmatprep.mubr.f32.mxu0 0.0
    %2199 = vmatmul.mubr.f32.gmra.mrb[0].mxu0 %v2037
    %v2200 = vpop.f32.mrb[0].mxu0
    %v2201 = vadd.f32 0.0, %v2200
    %v2202 = vpop.f32.mrb[0].mxu0
    %2203 = vdwg.mxu0
    %2205 = vrot.lane.b32.xlu0 %v2133, 64
    %v2206 = vpop.permute.xlu0 %2205
    %v2207 = vsel %vm238, %v2206, 0
    %2209 = vmatprep.subr.mxu0 0.0
    %2210 = vmatpush1.msra.mxu0 %v227
    %2211 = vmatprep.subr.mxu0 0.0
    %2212 = vmatpush1.msra.mxu0 %v228
    %2213 = vmatprep.subr.mxu0 0.0
    %2214 = vmatpush1.msra.mxu0 %v229
    %2215 = vmatprep.subr.mxu0 0.0
    %2216 = vmatpush1.msra.mxu0 %v230
    %2217 = vmatprep.subr.mxu0 0.0
    %2218 = vmatpush1.msra.mxu0 0.0
    %2219 = vmatprep.subr.mxu0 0.0
    %2220 = vmatpush1.msra.mxu0 0.0
    %2221 = vmatprep.subr.mxu0 0.0
    %2222 = vmatpush1.msra.mxu0 0.0
    %2223 = vmatprep.subr.mxu0 0.0
    %2224 = vmatpush1.msra.mxu0 0.0
    %2225 = vmatprep.subr.mxu0 0.0
    %2226 = vmatpush1.msra.mxu0 0.0
    %2227 = vmatprep.subr.mxu0 0.0
    %2228 = vmatpush1.msra.mxu0 0.0
    %2229 = vmatprep.subr.mxu0 0.0
    %2230 = vmatpush1.msra.mxu0 0.0
    %2231 = vmatprep.subr.mxu0 0.0
    %2232 = vmatpush1.msra.mxu0 0.0
    %2233 = vmatprep.subr.mxu0 0.0
    %2234 = vmatpush1.msra.mxu0 0.0
    %2235 = vmatprep.subr.mxu0 0.0
    %2236 = vmatpush1.msra.mxu0 0.0
    %2237 = vmatprep.subr.mxu0 0.0
    %2238 = vmatpush1.msra.mxu0 0.0
    %2239 = vmatprep.subr.mxu0 0.0
    %2240 = vmatpush1.msra.mxu0 0.0
    %2241 = vmatprep.subr.mxu0 0.0
    %2242 = vmatpush1.msra.mxu0 0.0
    %2243 = vmatprep.subr.mxu0 0.0
    %2244 = vmatpush1.msra.mxu0 0.0
    %2245 = vmatprep.subr.mxu0 0.0
    %2246 = vmatpush1.msra.mxu0 0.0
    %2247 = vmatprep.subr.mxu0 0.0
    %2248 = vmatpush1.msra.mxu0 0.0
    %2249 = vmatprep.subr.mxu0 0.0
    %2250 = vmatpush1.msra.mxu0 0.0
    %2251 = vmatprep.subr.mxu0 0.0
    %2252 = vmatpush1.msra.mxu0 0.0
    %2253 = vmatprep.subr.mxu0 0.0
    %2254 = vmatpush1.msra.mxu0 0.0
    %2255 = vmatprep.subr.mxu0 0.0
    %2256 = vmatpush1.msra.mxu0 0.0
    %2257 = vmatprep.subr.mxu0 0.0
    %2258 = vmatpush1.msra.mxu0 0.0
    %2259 = vmatprep.subr.mxu0 0.0
    %2260 = vmatpush1.msra.mxu0 0.0
    %2261 = vmatprep.subr.mxu0 0.0
    %2262 = vmatpush1.msra.mxu0 0.0
    %2263 = vmatprep.subr.mxu0 0.0
    %2264 = vmatpush1.msra.mxu0 0.0
    %2265 = vmatprep.subr.mxu0 0.0
    %2266 = vmatpush1.msra.mxu0 0.0
    %2267 = vmatprep.subr.mxu0 0.0
    %2268 = vmatpush1.msra.mxu0 0.0
    %2269 = vmatprep.subr.mxu0 0.0
    %2270 = vmatpush1.msra.mxu0 0.0
    %2271 = vmatprep.subr.mxu0 0.0
    %2272 = vmatpush1.msra.mxu0 0.0
    %2273 = vmatprep.mubr.f32.mxu0 0.0
    %2274 = vmatmul.mubr.f32.gmra.mrb[0].mxu0 %v2207
    %v2275 = vpop.f32.mrb[0].mxu0
    %v2276 = vadd.f32 0.0, %v2275
    %v2277 = vpop.f32.mrb[0].mxu0
    %2278 = vdwg.mxu0
    %v2279 = vld [vmem:[#allocation2 + $0x38] sm:$0xff]
    %v2280 = vadd.f32 %v2279, %v2201
    %v2281 = vxor.u32 %v2280, 2147483648
    %v2282 = vmul.f32 %v2281, 1.442695
    %v2283 = vpow.pop %v2282
    %v2284 = vadd.f32 %v2283, 1.0
    %v2285 = vrcp.pop %v2284
    %v2286 = vmul.f32 1.0, %v2285
    %v2287 = vtanh.pop %v2280
    %v2288 = vmul.f32 %v2286, %v2027
    %2290 = vrot.lane.b32.xlu0 %v2287, 32
    %v2291 = vpop.permute.xlu0 %2290
    %v2293 = vmul.f32 %v2286, %v2291
    %2295 = vrot.lane.b32.xlu0 %v2293, 32
    %v2296 = vpop.permute.xlu0 %2295
    %v2298 = vadd.f32 %v2288, %v2296
    %v2299 = vtanh.pop %v2298
    %2301 = vrot.lane.b32.xlu0 %v2299, 32
    %v2302 = vpop.permute.xlu0 %2301
    %v2304 = vmul.f32 %v2286, %v2302
    %2306 = vrot.lane.b32.xlu0 %v2304, 64
    %v2307 = vpop.permute.xlu0 %2306
    %v2308 = vsel %vm238, %v2307, 0
    %2310 = vmatprep.subr.mxu0 0.0
    %2311 = vmatpush1.msra.mxu0 %v223
    %2312 = vmatprep.subr.mxu0 0.0
    %2313 = vmatpush1.msra.mxu0 %v224
    %2314 = vmatprep.subr.mxu0 0.0
    %2315 = vmatpush1.msra.mxu0 %v225
    %2316 = vmatprep.subr.mxu0 0.0
    %2317 = vmatpush1.msra.mxu0 %v226
    %2318 = vmatprep.subr.mxu0 0.0
    %2319 = vmatpush1.msra.mxu0 0.0
    %2320 = vmatprep.subr.mxu0 0.0
    %2321 = vmatpush1.msra.mxu0 0.0
    %2322 = vmatprep.subr.mxu0 0.0
    %2323 = vmatpush1.msra.mxu0 0.0
    %2324 = vmatprep.subr.mxu0 0.0
    %2325 = vmatpush1.msra.mxu0 0.0
    %2326 = vmatprep.subr.mxu0 0.0
    %2327 = vmatpush1.msra.mxu0 0.0
    %2328 = vmatprep.subr.mxu0 0.0
    %2329 = vmatpush1.msra.mxu0 0.0
    %2330 = vmatprep.subr.mxu0 0.0
    %2331 = vmatpush1.msra.mxu0 0.0
    %2332 = vmatprep.subr.mxu0 0.0
    %2333 = vmatpush1.msra.mxu0 0.0
    %2334 = vmatprep.subr.mxu0 0.0
    %2335 = vmatpush1.msra.mxu0 0.0
    %2336 = vmatprep.subr.mxu0 0.0
    %2337 = vmatpush1.msra.mxu0 0.0
    %2338 = vmatprep.subr.mxu0 0.0
    %2339 = vmatpush1.msra.mxu0 0.0
    %2340 = vmatprep.subr.mxu0 0.0
    %2341 = vmatpush1.msra.mxu0 0.0
    %2342 = vmatprep.subr.mxu0 0.0
    %2343 = vmatpush1.msra.mxu0 0.0
    %2344 = vmatprep.subr.mxu0 0.0
    %2345 = vmatpush1.msra.mxu0 0.0
    %2346 = vmatprep.subr.mxu0 0.0
    %2347 = vmatpush1.msra.mxu0 0.0
    %2348 = vmatprep.subr.mxu0 0.0
    %2349 = vmatpush1.msra.mxu0 0.0
    %2350 = vmatprep.subr.mxu0 0.0
    %2351 = vmatpush1.msra.mxu0 0.0
    %2352 = vmatprep.subr.mxu0 0.0
    %2353 = vmatpush1.msra.mxu0 0.0
    %2354 = vmatprep.subr.mxu0 0.0
    %2355 = vmatpush1.msra.mxu0 0.0
    %2356 = vmatprep.subr.mxu0 0.0
    %2357 = vmatpush1.msra.mxu0 0.0
    %2358 = vmatprep.subr.mxu0 0.0
    %2359 = vmatpush1.msra.mxu0 0.0
    %2360 = vmatprep.subr.mxu0 0.0
    %2361 = vmatpush1.msra.mxu0 0.0
    %2362 = vmatprep.subr.mxu0 0.0
    %2363 = vmatpush1.msra.mxu0 0.0
    %2364 = vmatprep.subr.mxu0 0.0
    %2365 = vmatpush1.msra.mxu0 0.0
    %2366 = vmatprep.subr.mxu0 0.0
    %2367 = vmatpush1.msra.mxu0 0.0
    %2368 = vmatprep.subr.mxu0 0.0
    %2369 = vmatpush1.msra.mxu0 0.0
    %2370 = vmatprep.subr.mxu0 0.0
    %2371 = vmatpush1.msra.mxu0 0.0
    %2372 = vmatprep.subr.mxu0 0.0
    %2373 = vmatpush1.msra.mxu0 0.0
    %2374 = vmatprep.mubr.f32.mxu0 0.0
    %2375 = vmatmul.mubr.f32.gmra.mrb[0].mxu0 %v2308
    %v2376 = vpop.f32.mrb[0].mxu0
    %v2377 = vadd.f32 %v2276, %v2376
    %v2378 = vpop.f32.mrb[0].mxu0
    %2379 = vdwg.mxu0
    %v2380 = vadd.f32 %v2377, %v236
    %v2381 = vxor.u32 %v2380, 2147483648
    %v2382 = vmul.f32 %v2381, 1.442695
    %v2383 = vpow.pop %v2382
    %v2384 = vadd.f32 %v2383, 1.0
    %v2385 = vrcp.pop %v2384
    %v2386 = vmul.f32 1.0, %v2385
    %v2387 = vtanh.pop %v2380
    %v2388 = vmul.f32 %v2386, %v2127
    %2390 = vrot.lane.b32.xlu0 %v2387, 32
    %v2391 = vpop.permute.xlu0 %2390
    %v2393 = vmul.f32 %v2386, %v2391
    %2395 = vrot.lane.b32.xlu0 %v2393, 32
    %v2396 = vpop.permute.xlu0 %2395
    %v2398 = vadd.f32 %v2388, %v2396
    %v2399 = vtanh.pop %v2398
    %2401 = vrot.lane.b32.xlu0 %v2399, 32
    %v2402 = vpop.permute.xlu0 %2401
    %v2404 = vmul.f32 %v2386, %v2402
    %v2405 = vld [vmem:[#allocation6] sm:$0xff]
    %v2406 = vld [vmem:[#allocation6 + $0x8] sm:$0xff]
    %v2407 = vld [vmem:[#allocation6 + $0x10] sm:$0xff]
    %v2408 = vld [vmem:[#allocation6 + $0x18] sm:$0xff]
    %v2409 = vld [vmem:[%s8] sm:$0x1]
    %v2411 = vlaneseq
    %v2412 = vshrl.u32 %v2411, 7
    %v2413 = vsub.s32 0, %v2412
    %v2414 = vrot.slane %v2409, %v2413
    %2417 = vrot.lane.b32.xlu0 %v2404, 64
    %v2418 = vpop.permute.xlu0 %2417
    %v2419 = vsel %vm238, %v2418, 0
    %2421 = vmatprep.subr.mxu0 0.0
    %2422 = vmatpush1.msra.mxu0 %v2405
    %2423 = vmatprep.subr.mxu0 0.0
    %2424 = vmatpush1.msra.mxu0 %v2406
    %2425 = vmatprep.subr.mxu0 0.0
    %2426 = vmatpush1.msra.mxu0 %v2407
    %2427 = vmatprep.subr.mxu0 0.0
    %2428 = vmatpush1.msra.mxu0 %v2408
    %2429 = vmatprep.subr.mxu0 0.0
    %2430 = vmatpush1.msra.mxu0 0.0
    %2431 = vmatprep.subr.mxu0 0.0
    %2432 = vmatpush1.msra.mxu0 0.0
    %2433 = vmatprep.subr.mxu0 0.0
    %2434 = vmatpush1.msra.mxu0 0.0
    %2435 = vmatprep.subr.mxu0 0.0
    %2436 = vmatpush1.msra.mxu0 0.0
    %2437 = vmatprep.subr.mxu0 0.0
    %2438 = vmatpush1.msra.mxu0 0.0
    %2439 = vmatprep.subr.mxu0 0.0
    %2440 = vmatpush1.msra.mxu0 0.0
    %2441 = vmatprep.subr.mxu0 0.0
    %2442 = vmatpush1.msra.mxu0 0.0
    %2443 = vmatprep.subr.mxu0 0.0
    %2444 = vmatpush1.msra.mxu0 0.0
    %2445 = vmatprep.subr.mxu0 0.0
    %2446 = vmatpush1.msra.mxu0 0.0
    %2447 = vmatprep.subr.mxu0 0.0
    %2448 = vmatpush1.msra.mxu0 0.0
    %2449 = vmatprep.subr.mxu0 0.0
    %2450 = vmatpush1.msra.mxu0 0.0
    %2451 = vmatprep.subr.mxu0 0.0
    %2452 = vmatpush1.msra.mxu0 0.0
    %2453 = vmatprep.subr.mxu0 0.0
    %2454 = vmatpush1.msra.mxu0 0.0
    %2455 = vmatprep.subr.mxu0 0.0
    %2456 = vmatpush1.msra.mxu0 0.0
    %2457 = vmatprep.subr.mxu0 0.0
    %2458 = vmatpush1.msra.mxu0 0.0
    %2459 = vmatprep.subr.mxu0 0.0
    %2460 = vmatpush1.msra.mxu0 0.0
    %2461 = vmatprep.subr.mxu0 0.0
    %2462 = vmatpush1.msra.mxu0 0.0
    %2463 = vmatprep.subr.mxu0 0.0
    %2464 = vmatpush1.msra.mxu0 0.0
    %2465 = vmatprep.subr.mxu0 0.0
    %2466 = vmatpush1.msra.mxu0 0.0
    %2467 = vmatprep.subr.mxu0 0.0
    %2468 = vmatpush1.msra.mxu0 0.0
    %2469 = vmatprep.subr.mxu0 0.0
    %2470 = vmatpush1.msra.mxu0 0.0
    %2471 = vmatprep.subr.mxu0 0.0
    %2472 = vmatpush1.msra.mxu0 0.0
    %2473 = vmatprep.subr.mxu0 0.0
    %2474 = vmatpush1.msra.mxu0 0.0
    %2475 = vmatprep.subr.mxu0 0.0
    %2476 = vmatpush1.msra.mxu0 0.0
    %2477 = vmatprep.subr.mxu0 0.0
    %2478 = vmatpush1.msra.mxu0 0.0
    %2479 = vmatprep.subr.mxu0 0.0
    %2480 = vmatpush1.msra.mxu0 0.0
    %2481 = vmatprep.subr.mxu0 0.0
    %2482 = vmatpush1.msra.mxu0 0.0
    %2483 = vmatprep.subr.mxu0 0.0
    %2484 = vmatpush1.msra.mxu0 0.0
    %2485 = vmatprep.mubr.f32.mxu0 0.0
    %2486 = vmatmul.mubr.f32.gmra.mrb[0].mxu0 %v2419
    %v2487 = vpop.f32.mrb[0].mxu0
    %v2488 = vadd.f32 %v2414, %v2487
    %v2489 = vpop.f32.mrb[0].mxu0
    %2490 = vdwg.mxu0
    %2491 = vst [vmem:[#allocation8] sm:$0xff] %v2488
    // Predicated region
    $region46: #{tpu_custom_call.1} parent=1 // pred_check
      _
    $region47: #{tpu_custom_call.1} parent=1 // pred_check_branch
      %2493 = sbr.rel (0) target = $region49
    $region48: #{tpu_custom_call.1} parent=1 // pred_region
      %s2495 = ssub.s32 128, 128
      %2496 = vsyncadd [#allocation5], %s2495
      %s2498 = sshll.u32 [#allocation8], 4
      %s2499 = int_to_ptr.vmem [resolvable:$true] %s2498
      %2501 = dma.vmem_to_hbm [thread:$0]  %s2499, 128, %s9, [#allocation5]
    $region49: #{tpu_custom_call.1} parent=1 // pred_fallthru
      _
    // Predicated region
    $region50: #{tpu_custom_call.1} parent=1 // pred_check
      _
    $region51: #{tpu_custom_call.1} parent=1 // pred_check_branch
      %2503 = sbr.rel (0) target = $region53
    $region52: #{tpu_custom_call.1} parent=1 // pred_region
      %2504 = dma.done [#allocation5], 128
    $region53: #{tpu_custom_call.1} parent=1 // pred_fallthru
      _
    %2505 = vsyncpa [#allocation4], 1
    %2506 = vsyncpa [#allocation7], 1
    %2507 = vsyncpa [#allocation5], 1

</llo_original>
